<compile_context>
chip_gen: v5e
topology: v5e:2x2
jax: 0.10.0
libtpu: 0.0.40
codegen_flags: <defaults>
</compile_context>

<pallas_src>
import functools
import math

import jax
import jax.numpy as jnp
from jax.experimental import pallas as pl
from jax.experimental.pallas import tpu as pltpu


# ----------------------------- in-kernel helpers -----------------------------

def _layernorm(x, gamma, beta, eps):
    mean = jnp.mean(x, axis=-1, keepdims=True)
    var = jnp.mean(jnp.square(x - mean), axis=-1, keepdims=True)
    return (x - mean) * jax.lax.rsqrt(var + eps) * gamma + beta


def _gelu(x):
    # NOTE: tanh-approximate GELU (BERT's "gelu_new"); HF default 'gelu' is the erf form.
    # Numeric drift is tiny and the tanh form lowers cleanly on the EUP.
    return 0.5 * x * (1.0 + jnp.tanh(0.7978845608028654 * (x + 0.044715 * x * x * x)))


# ----------------------------- fused encoder kernel -----------------------------

def _encoder_kernel(x_emb_ref, mask_ref, emb_g_ref, emb_b_ref,
                    qkv_w_ref, qkv_b_ref, o_w_ref, o_b_ref,
                    ln1_g_ref, ln1_b_ref, i_w_ref, i_b_ref,
                    d_w_ref, d_b_ref, ln2_g_ref, ln2_b_ref,
                    fe_w_ref, fe_b_ref,
                    out_ref, x_vmem,
                    *, n_heads, batch, seq, eps):
    layer = pl.program_id(0)

    @pl.when(layer == 0)
    def _():
        # Embedding LayerNorm -> initialize the VMEM-resident activation carry.
        x_vmem[...] = _layernorm(x_emb_ref[...], emb_g_ref[...], emb_b_ref[...], eps)

    x = x_vmem[...]                                  # (B*S, H) f32, resident across layers
    H = x.shape[-1]
    D = H // n_heads

    # ---- fused QKV projection (1/sqrt(D) pre-folded into the Q weights) ----
    qkv = jnp.dot(x.astype(jnp.bfloat16), qkv_w_ref[0],
                  preferred_element_type=jnp.float32) + qkv_b_ref[0]      # (B*S, 3H) f32

    mask = mask_ref[...]                             # (B, S, S) additive attention mask

    # ---- multi-head self-attention: heads sliced in-kernel (no HBM transposes) ----
    ctx_heads = []
    for h in range(n_heads):
        q = qkv[:, h * D:(h + 1) * D].reshape(batch, seq, D)
        k = qkv[:, H + h * D:H + (h + 1) * D].reshape(batch, seq, D)
        v = qkv[:, 2 * H + h * D:2 * H + (h + 1) * D].reshape(batch, seq, D)
        s = jnp.einsum("bqd,bkd->bqk",
                       q.astype(jnp.bfloat16), k.astype(jnp.bfloat16),
                       preferred_element_type=jnp.float32) + mask          # (B, S, S) f32
        s = s - jnp.max(s, axis=-1, keepdims=True)
        p = jnp.exp(s)
        p = p * pl.reciprocal(jnp.sum(p, axis=-1, keepdims=True), approx=True)
        ctx = jnp.einsum("bqk,bkd->bqd",
                         p.astype(jnp.bfloat16), v.astype(jnp.bfloat16),
                         preferred_element_type=jnp.float32)               # (B, S, D) f32
        ctx_heads.append(ctx.reshape(batch * seq, D))
    ctx = jnp.concatenate(ctx_heads, axis=-1)        # (B*S, H)

    # ---- attention output projection + residual + LayerNorm ----
    attn_out = jnp.dot(ctx.astype(jnp.bfloat16), o_w_ref[0],
                       preferred_element_type=jnp.float32) + o_b_ref[0]
    x = _layernorm(attn_out + x, ln1_g_ref[0], ln1_b_ref[0], eps)

    # ---- feed-forward (GELU) + residual + LayerNorm ----
    inter = jnp.dot(x.astype(jnp.bfloat16), i_w_ref[0],
                    preferred_element_type=jnp.float32) + i_b_ref[0]
    inter = _gelu(inter)
    ffn = jnp.dot(inter.astype(jnp.bfloat16), d_w_ref[0],
                  preferred_element_type=jnp.float32) + d_b_ref[0]
    x = _layernorm(ffn + x, ln2_g_ref[0], ln2_b_ref[0], eps)
    x_vmem[...] = x

    # ---- last layer: CLS token -> dropout (identity in eval) -> Linear(H, 512) ----
    # TODO(synk): training-mode dropout (stochastic masking) not implemented.
    @pl.when(layer == pl.num_programs(0) - 1)
    def _():
        cls = x.reshape(batch, seq, H)[:, 0, :]                             # (B, H)
        out_ref[...] = (jnp.dot(cls.astype(jnp.bfloat16), fe_w_ref[...],
                                preferred_element_type=jnp.float32)
                        + fe_b_ref[...])                                    # (B, 512)


# ----------------------------- parameters -----------------------------

def init_params(key, *, vocab_size, hidden, n_layers, n_heads, intermediate,
                max_pos, out_features):
    """Weights already laid out for the fused kernel: stacked per-layer, QKV concatenated,
    1/sqrt(head_dim) folded into Q, matmul weights in bf16 (f32 accumulation in-kernel)."""
    d_head = hidden // n_heads
    scale = 1.0 / math.sqrt(d_head)

    def nrm(k, shape, std=0.02):
        return std * jax.random.normal(k, shape, dtype=jnp.float32)

    keys = iter(jax.random.split(key, 4 + 6 * n_layers))
    word = nrm(next(keys), (vocab_size, hidden))
    pos = nrm(next(keys), (max_pos, hidden))
    typ = nrm(next(keys), (2, hidden))
    fe_w = nrm(next(keys), (hidden, out_features))

    qkv_w, qkv_b, o_w, o_b = [], [], [], []
    ln1_g, ln1_b, i_w, i_b, d_w, d_b, ln2_g, ln2_b = ([] for _ in range(8))
    for _ in range(n_layers):
        qw = nrm(next(keys), (hidden, hidden)) * scale          # fold 1/sqrt(D) into Q proj
        kw = nrm(next(keys), (hidden, hidden))
        vw = nrm(next(keys), (hidden, hidden))
        qkv_w.append(jnp.concatenate([qw, kw, vw], axis=1))
        qkv_b.append(jnp.zeros((1, 3 * hidden), jnp.float32))
        o_w.append(nrm(next(keys), (hidden, hidden)))
        o_b.append(jnp.zeros((1, hidden), jnp.float32))
        ln1_g.append(jnp.ones((1, hidden), jnp.float32))
        ln1_b.append(jnp.zeros((1, hidden), jnp.float32))
        i_w.append(nrm(next(keys), (hidden, intermediate)))
        i_b.append(jnp.zeros((1, intermediate), jnp.float32))
        d_w.append(nrm(next(keys), (intermediate, hidden)))
        d_b.append(jnp.zeros((1, hidden), jnp.float32))
        ln2_g.append(jnp.ones((1, hidden), jnp.float32))
        ln2_b.append(jnp.zeros((1, hidden), jnp.float32))

    stack = lambda xs: jnp.stack(xs, axis=0)
    return {
        "word_emb": word, "pos_emb": pos, "type_emb": typ,
        "emb_ln_g": jnp.ones((1, hidden), jnp.float32),
        "emb_ln_b": jnp.zeros((1, hidden), jnp.float32),
        "qkv_w": stack(qkv_w).astype(jnp.bfloat16), "qkv_b": stack(qkv_b),
        "o_w": stack(o_w).astype(jnp.bfloat16), "o_b": stack(o_b),
        "ln1_g": stack(ln1_g), "ln1_b": stack(ln1_b),
        "i_w": stack(i_w).astype(jnp.bfloat16), "i_b": stack(i_b),
        "d_w": stack(d_w).astype(jnp.bfloat16), "d_b": stack(d_b),
        "ln2_g": stack(ln2_g), "ln2_b": stack(ln2_b),
        "fe_w": fe_w.astype(jnp.bfloat16),
        "fe_b": jnp.zeros((1, out_features), jnp.float32),
    }


# ----------------------------- forward pass -----------------------------

def text_model_forward(params, input_ids, attention_mask, *, n_heads):
    B, S = input_ids.shape
    H = params["word_emb"].shape[1]
    L = params["qkv_w"].shape[0]
    I = params["i_w"].shape[2]
    OUT = params["fe_w"].shape[1]

    # --- embeddings (gather is JAX glue; everything else is inside the fused kernel) ---
    x_emb = (params["word_emb"][input_ids]
             + params["pos_emb"][:S][None, :, :]
             + params["type_emb"][0][None, None, :]).reshape(B * S, H)

    # additive attention mask, matching HF BERT extended-mask semantics; broadcast over q pos.
    add_mask = (1.0 - attention_mask.astype(jnp.float32)) * -10000.0            # (B, S)
    mask_bss = jnp.broadcast_to(add_mask[:, None, :], (B, S, S))

    def fixed(shape):
        return pl.BlockSpec(shape, lambda l: (0,) * len(shape))

    def per_layer(shape2d):
        return pl.BlockSpec((1,) + shape2d, lambda l: (l, 0, 0))

    kernel = functools.partial(_encoder_kernel, n_heads=n_heads, batch=B, seq=S, eps=1e-12)

    out = pl.pallas_call(
        kernel,
        out_shape=jax.ShapeDtypeStruct((B, OUT), jnp.float32),
        grid=(L,),
        in_specs=[
            fixed((B * S, H)),         # x_emb
            fixed((B, S, S)),          # additive attention mask
            fixed((1, H)),             # emb_ln_g
            fixed((1, H)),             # emb_ln_b
            per_layer((H, 3 * H)),     # qkv_w (bf16)
            per_layer((1, 3 * H)),     # qkv_b
            per_layer((H, H)),         # o_w (bf16)
            per_layer((1, H)),         # o_b
            per_layer((1, H)),         # ln1_g
            per_layer((1, H)),         # ln1_b
            per_layer((H, I)),         # i_w (bf16)
            per_layer((1, I)),         # i_b
            per_layer((I, H)),         # d_w (bf16)
            per_layer((1, H)),         # d_b
            per_layer((1, H)),         # ln2_g
            per_layer((1, H)),         # ln2_b
            fixed((H, OUT)),           # fe_w (bf16)
            fixed((1, OUT)),           # fe_b
        ],
        out_specs=fixed((B, OUT)),
        scratch_shapes=[pltpu.VMEM((B * S, H), jnp.float32)],  # layer-to-layer activation carry
        compiler_params=pltpu.CompilerParams(
            # layer axis carries state in VMEM scratch -> must be sequential
            dimension_semantics=("arbitrary",)),
    )(x_emb, mask_bss, params["emb_ln_g"], params["emb_ln_b"],
      params["qkv_w"], params["qkv_b"], params["o_w"], params["o_b"],
      params["ln1_g"], params["ln1_b"], params["i_w"], params["i_b"],
      params["d_w"], params["d_b"], params["ln2_g"], params["ln2_b"],
      params["fe_w"], params["fe_b"])
    return out


# ----------------------------- driver -----------------------------

if __name__ == "__main__":
    B, S = 2, 8
    HIDDEN, N_HEADS, N_LAYERS, INTER = 32, 4, 2, 64
    VOCAB, MAX_POS, OUT = 100, 16, 512

    key = jax.random.PRNGKey(0)
    pkey, ikey = jax.random.split(key)
    params = init_params(pkey, vocab_size=VOCAB, hidden=HIDDEN, n_layers=N_LAYERS,
                         n_heads=N_HEADS, intermediate=INTER, max_pos=MAX_POS,
                         out_features=OUT)

    input_ids = jax.random.randint(ikey, (B, S), 0, VOCAB, dtype=jnp.int32)
    attention_mask = jnp.concatenate(
        [jnp.ones((B, S - 2), jnp.int32), jnp.zeros((B, 2), jnp.int32)], axis=1)

    fwd = jax.jit(functools.partial(text_model_forward, n_heads=N_HEADS))
    out = fwd(params, input_ids, attention_mask)
    out = jax.block_until_ready(out)

    assert out.shape == (B, OUT) and out.dtype == jnp.float32
    assert bool(jnp.all(jnp.isfinite(out)))
    print("KERNEL_OK")
</pallas_src>

<mosaic_0001>
module attributes {stable_mosaic.version = 11 : i64} {
  func.func @_encoder_kernel(%arg0: i32, %arg1: memref<16x32xf32, #tpu.memory_space<vmem>>, %arg2: memref<2x8x8xf32, #tpu.memory_space<vmem>>, %arg3: memref<1x32xf32, #tpu.memory_space<vmem>>, %arg4: memref<1x32xf32, #tpu.memory_space<vmem>>, %arg5: memref<1x32x96xbf16, #tpu.memory_space<vmem>>, %arg6: memref<1x1x96xf32, #tpu.memory_space<vmem>>, %arg7: memref<1x32x32xbf16, #tpu.memory_space<vmem>>, %arg8: memref<1x1x32xf32, #tpu.memory_space<vmem>>, %arg9: memref<1x1x32xf32, #tpu.memory_space<vmem>>, %arg10: memref<1x1x32xf32, #tpu.memory_space<vmem>>, %arg11: memref<1x32x64xbf16, #tpu.memory_space<vmem>>, %arg12: memref<1x1x64xf32, #tpu.memory_space<vmem>>, %arg13: memref<1x64x32xbf16, #tpu.memory_space<vmem>>, %arg14: memref<1x1x32xf32, #tpu.memory_space<vmem>>, %arg15: memref<1x1x32xf32, #tpu.memory_space<vmem>>, %arg16: memref<1x1x32xf32, #tpu.memory_space<vmem>>, %arg17: memref<32x512xbf16, #tpu.memory_space<vmem>>, %arg18: memref<1x512xf32, #tpu.memory_space<vmem>>, %arg19: memref<2x512xf32, #tpu.memory_space<vmem>>, %arg20: memref<16x32xf32, #tpu.memory_space<vmem>>) attributes {dimension_semantics = [#tpu.dimension_semantics<arbitrary>], iteration_bounds = array<i64: 2>, scalar_prefetch = 0 : i64, scratch_operands = 1 : i64, tpu.core_type = #tpu.core_type<tc>, window_params = [{pipeline_mode = #tpu.pipeline_mode<synchronous>, transform_indices = @transform_0, window_bounds = array<i64: 16, 32>}, {pipeline_mode = #tpu.pipeline_mode<synchronous>, transform_indices = @transform_1, window_bounds = array<i64: 2, 8, 8>}, {pipeline_mode = #tpu.pipeline_mode<synchronous>, transform_indices = @transform_2, window_bounds = array<i64: 1, 32>}, {pipeline_mode = #tpu.pipeline_mode<synchronous>, transform_indices = @transform_3, window_bounds = array<i64: 1, 32>}, {transform_indices = @transform_4, window_bounds = array<i64: 1, 32, 96>}, {transform_indices = @transform_5, window_bounds = array<i64: 1, 1, 96>}, {transform_indices = @transform_6, window_bounds = array<i64: 1, 32, 32>}, {transform_indices = @transform_7, window_bounds = array<i64: 1, 1, 32>}, {transform_indices = @transform_8, window_bounds = array<i64: 1, 1, 32>}, {transform_indices = @transform_9, window_bounds = array<i64: 1, 1, 32>}, {transform_indices = @transform_10, window_bounds = array<i64: 1, 32, 64>}, {transform_indices = @transform_11, window_bounds = array<i64: 1, 1, 64>}, {transform_indices = @transform_12, window_bounds = array<i64: 1, 64, 32>}, {transform_indices = @transform_13, window_bounds = array<i64: 1, 1, 32>}, {transform_indices = @transform_14, window_bounds = array<i64: 1, 1, 32>}, {transform_indices = @transform_15, window_bounds = array<i64: 1, 1, 32>}, {pipeline_mode = #tpu.pipeline_mode<synchronous>, transform_indices = @transform_16, window_bounds = array<i64: 32, 512>}, {pipeline_mode = #tpu.pipeline_mode<synchronous>, transform_indices = @transform_17, window_bounds = array<i64: 1, 512>}, {pipeline_mode = #tpu.pipeline_mode<synchronous>, transform_indices = @transform_18, window_bounds = array<i64: 2, 512>}]} {
    %c0_i32 = arith.constant 0 : i32
    %0 = arith.cmpi eq, %arg0, %c0_i32 : i32
    %1 = arith.extui %0 : i1 to i32
    %c0_i32_0 = arith.constant 0 : i32
    %2 = arith.cmpi ne, %1, %c0_i32_0 : i32
    scf.if %2 {
      %c0_77 = arith.constant 0 : index
      %c0_78 = arith.constant 0 : index
      %205 = vector.load %arg1[%c0_77, %c0_78] : memref<16x32xf32, #tpu.memory_space<vmem>>, vector<16x32xf32>
      %c0_79 = arith.constant 0 : index
      %c0_80 = arith.constant 0 : index
      %206 = vector.load %arg3[%c0_79, %c0_80] : memref<1x32xf32, #tpu.memory_space<vmem>>, vector<1x32xf32>
      %c0_81 = arith.constant 0 : index
      %c0_82 = arith.constant 0 : index
      %207 = vector.load %arg4[%c0_81, %c0_82] : memref<1x32xf32, #tpu.memory_space<vmem>>, vector<1x32xf32>
      %cst_83 = arith.constant dense<0.000000e+00> : vector<16xf32>
      %208 = vector.multi_reduction <add>, %205, %cst_83 [1] : vector<16x32xf32> to vector<16xf32>
      %209 = vector.shape_cast %208 : vector<16xf32> to vector<16x1xf32>
      %cst_84 = arith.constant 3.200000e+01 : f32
      %210 = vector.broadcast %cst_84 : f32 to vector<16x1xf32>
      %211 = arith.divf %209, %210 : vector<16x1xf32>
      %212 = vector.broadcast %211 : vector<16x1xf32> to vector<16x32xf32>
      %213 = arith.subf %205, %212 : vector<16x32xf32>
      %214 = arith.mulf %213, %213 : vector<16x32xf32>
      %cst_85 = arith.constant dense<0.000000e+00> : vector<16xf32>
      %215 = vector.multi_reduction <add>, %214, %cst_85 [1] : vector<16x32xf32> to vector<16xf32>
      %216 = vector.shape_cast %215 : vector<16xf32> to vector<16x1xf32>
      %cst_86 = arith.constant 3.200000e+01 : f32
      %217 = vector.broadcast %cst_86 : f32 to vector<16x1xf32>
      %218 = arith.divf %216, %217 : vector<16x1xf32>
      %219 = vector.broadcast %211 : vector<16x1xf32> to vector<16x32xf32>
      %220 = arith.subf %205, %219 : vector<16x32xf32>
      %cst_87 = arith.constant 9.99999996E-13 : f32
      %221 = vector.broadcast %cst_87 : f32 to vector<16x1xf32>
      %222 = arith.addf %218, %221 : vector<16x1xf32>
      %223 = math.rsqrt %222 : vector<16x1xf32>
      %224 = vector.broadcast %223 : vector<16x1xf32> to vector<16x32xf32>
      %225 = arith.mulf %220, %224 : vector<16x32xf32>
      %226 = vector.broadcast %206 : vector<1x32xf32> to vector<16x32xf32>
      %227 = arith.mulf %225, %226 : vector<16x32xf32>
      %228 = vector.broadcast %207 : vector<1x32xf32> to vector<16x32xf32>
      %229 = arith.addf %227, %228 : vector<16x32xf32>
      %c0_88 = arith.constant 0 : index
      %c0_89 = arith.constant 0 : index
      %230 = vector.load %arg20[%c0_88, %c0_89] : memref<16x32xf32, #tpu.memory_space<vmem>>, vector<16x32xf32>
      tpu.vector_store %arg20[%c0_88, %c0_89], %229 {strides = array<i32>} : memref<16x32xf32, #tpu.memory_space<vmem>>, vector<16x32xf32>,
    } else {
    }
    %c0 = arith.constant 0 : index
    %c0_1 = arith.constant 0 : index
    %3 = vector.load %arg20[%c0, %c0_1] : memref<16x32xf32, #tpu.memory_space<vmem>>, vector<16x32xf32>
    %4 = arith.truncf %3 : vector<16x32xf32> to vector<16x32xbf16>
    %c0_2 = arith.constant 0 : index
    %c0_3 = arith.constant 0 : index
    %c0_4 = arith.constant 0 : index
    %5 = vector.load %arg5[%c0_2, %c0_3, %c0_4] : memref<1x32x96xbf16, #tpu.memory_space<vmem>>, vector<1x32x96xbf16>
    %6 = vector.shape_cast %5 : vector<1x32x96xbf16> to vector<32x96xbf16>
    %cst = arith.constant dense<0.000000e+00> : vector<16x96xf32>
    %7 = tpu.matmul %4, %6, %cst {dimension_numbers = #tpu.dot_dimension_numbers<[1], [0], [0], [1], [0, 0, 1, 1], [], []>} : vector<16x32xbf16>, vector<32x96xbf16>, vector<16x96xf32> -> vector<16x96xf32>
    %c0_5 = arith.constant 0 : index
    %c0_6 = arith.constant 0 : index
    %c0_7 = arith.constant 0 : index
    %8 = vector.load %arg6[%c0_5, %c0_6, %c0_7] : memref<1x1x96xf32, #tpu.memory_space<vmem>>, vector<1x1x96xf32>
    %9 = vector.shape_cast %8 : vector<1x1x96xf32> to vector<1x96xf32>
    %10 = vector.broadcast %9 : vector<1x96xf32> to vector<16x96xf32>
    %11 = arith.addf %7, %10 : vector<16x96xf32>
    %c0_8 = arith.constant 0 : index
    %c0_9 = arith.constant 0 : index
    %c0_10 = arith.constant 0 : index
    %12 = vector.load %arg2[%c0_8, %c0_9, %c0_10] : memref<2x8x8xf32, #tpu.memory_space<vmem>>, vector<2x8x8xf32>
    %13 = vector.extract_strided_slice %11 {offsets = [0, 0], sizes = [16, 8], strides = [1, 1]} : vector<16x96xf32> to vector<16x8xf32>
    %14 = vector.shape_cast %13 : vector<16x8xf32> to vector<2x8x8xf32>
    %15 = vector.extract_strided_slice %11 {offsets = [0, 32], sizes = [16, 8], strides = [1, 1]} : vector<16x96xf32> to vector<16x8xf32>
    %16 = vector.shape_cast %15 : vector<16x8xf32> to vector<2x8x8xf32>
    %17 = vector.extract_strided_slice %11 {offsets = [0, 64], sizes = [16, 8], strides = [1, 1]} : vector<16x96xf32> to vector<16x8xf32>
    %18 = vector.shape_cast %17 : vector<16x8xf32> to vector<2x8x8xf32>
    %19 = arith.truncf %14 : vector<2x8x8xf32> to vector<2x8x8xbf16>
    %20 = arith.truncf %16 : vector<2x8x8xf32> to vector<2x8x8xbf16>
    "tpu.trace_start"() <{level = 10 : i32, message = "bqd,bkd->bqk"}> : () -> ()
    %cst_11 = arith.constant dense<0.000000e+00> : vector<2x8x8xf32>
    %21 = tpu.matmul %19, %20, %cst_11 {dimension_numbers = #tpu.dot_dimension_numbers<[2], [2], [1], [1], [0, 0, 0, 1, 1, 1], [0], [0]>} : vector<2x8x8xbf16>, vector<2x8x8xbf16>, vector<2x8x8xf32> -> vector<2x8x8xf32>
    "tpu.trace_stop"() : () -> ()
    %22 = arith.addf %21, %12 : vector<2x8x8xf32>
    %cst_12 = arith.constant dense<0xFF800000> : vector<2x8xf32>
    %23 = vector.multi_reduction <maximumf>, %22, %cst_12 [2] : vector<2x8x8xf32> to vector<2x8xf32>
    %24 = vector.shape_cast %23 : vector<2x8xf32> to vector<2x8x1xf32>
    %25 = vector.broadcast %24 : vector<2x8x1xf32> to vector<2x8x8xf32>
    %26 = arith.subf %22, %25 : vector<2x8x8xf32>
    %27 = math.exp %26 : vector<2x8x8xf32>
    %cst_13 = arith.constant dense<0.000000e+00> : vector<2x8xf32>
    %28 = vector.multi_reduction <add>, %27, %cst_13 [2] : vector<2x8x8xf32> to vector<2x8xf32>
    %29 = vector.shape_cast %28 : vector<2x8xf32> to vector<2x8x1xf32>
    %30 = tpu.reciprocal %29 {approx = true} : vector<2x8x1xf32> -> vector<2x8x1xf32>
    %31 = vector.broadcast %30 : vector<2x8x1xf32> to vector<2x8x8xf32>
    %32 = arith.mulf %27, %31 : vector<2x8x8xf32>
    %33 = arith.truncf %32 : vector<2x8x8xf32> to vector<2x8x8xbf16>
    %34 = arith.truncf %18 : vector<2x8x8xf32> to vector<2x8x8xbf16>
    "tpu.trace_start"() <{level = 10 : i32, message = "bqk,bkd->bqd"}> : () -> ()
    %cst_14 = arith.constant dense<0.000000e+00> : vector<2x8x8xf32>
    %35 = tpu.matmul %33, %34, %cst_14 {dimension_numbers = #tpu.dot_dimension_numbers<[2], [1], [1], [2], [0, 0, 0, 1, 1, 2], [0], [0]>} : vector<2x8x8xbf16>, vector<2x8x8xbf16>, vector<2x8x8xf32> -> vector<2x8x8xf32>
    "tpu.trace_stop"() : () -> ()
    %36 = vector.shape_cast %35 : vector<2x8x8xf32> to vector<16x8xf32>
    %37 = vector.extract_strided_slice %11 {offsets = [0, 8], sizes = [16, 8], strides = [1, 1]} : vector<16x96xf32> to vector<16x8xf32>
    %38 = vector.shape_cast %37 : vector<16x8xf32> to vector<2x8x8xf32>
    %39 = vector.extract_strided_slice %11 {offsets = [0, 40], sizes = [16, 8], strides = [1, 1]} : vector<16x96xf32> to vector<16x8xf32>
    %40 = vector.shape_cast %39 : vector<16x8xf32> to vector<2x8x8xf32>
    %41 = vector.extract_strided_slice %11 {offsets = [0, 72], sizes = [16, 8], strides = [1, 1]} : vector<16x96xf32> to vector<16x8xf32>
    %42 = vector.shape_cast %41 : vector<16x8xf32> to vector<2x8x8xf32>
    %43 = arith.truncf %38 : vector<2x8x8xf32> to vector<2x8x8xbf16>
    %44 = arith.truncf %40 : vector<2x8x8xf32> to vector<2x8x8xbf16>
    "tpu.trace_start"() <{level = 10 : i32, message = "bqd,bkd->bqk"}> : () -> ()
    %cst_15 = arith.constant dense<0.000000e+00> : vector<2x8x8xf32>
    %45 = tpu.matmul %43, %44, %cst_15 {dimension_numbers = #tpu.dot_dimension_numbers<[2], [2], [1], [1], [0, 0, 0, 1, 1, 1], [0], [0]>} : vector<2x8x8xbf16>, vector<2x8x8xbf16>, vector<2x8x8xf32> -> vector<2x8x8xf32>
    "tpu.trace_stop"() : () -> ()
    %46 = arith.addf %45, %12 : vector<2x8x8xf32>
    %cst_16 = arith.constant dense<0xFF800000> : vector<2x8xf32>
    %47 = vector.multi_reduction <maximumf>, %46, %cst_16 [2] : vector<2x8x8xf32> to vector<2x8xf32>
    %48 = vector.shape_cast %47 : vector<2x8xf32> to vector<2x8x1xf32>
    %49 = vector.broadcast %48 : vector<2x8x1xf32> to vector<2x8x8xf32>
    %50 = arith.subf %46, %49 : vector<2x8x8xf32>
    %51 = math.exp %50 : vector<2x8x8xf32>
    %cst_17 = arith.constant dense<0.000000e+00> : vector<2x8xf32>
    %52 = vector.multi_reduction <add>, %51, %cst_17 [2] : vector<2x8x8xf32> to vector<2x8xf32>
    %53 = vector.shape_cast %52 : vector<2x8xf32> to vector<2x8x1xf32>
    %54 = tpu.reciprocal %53 {approx = true} : vector<2x8x1xf32> -> vector<2x8x1xf32>
    %55 = vector.broadcast %54 : vector<2x8x1xf32> to vector<2x8x8xf32>
    %56 = arith.mulf %51, %55 : vector<2x8x8xf32>
    %57 = arith.truncf %56 : vector<2x8x8xf32> to vector<2x8x8xbf16>
    %58 = arith.truncf %42 : vector<2x8x8xf32> to vector<2x8x8xbf16>
    "tpu.trace_start"() <{level = 10 : i32, message = "bqk,bkd->bqd"}> : () -> ()
    %cst_18 = arith.constant dense<0.000000e+00> : vector<2x8x8xf32>
    %59 = tpu.matmul %57, %58, %cst_18 {dimension_numbers = #tpu.dot_dimension_numbers<[2], [1], [1], [2], [0, 0, 0, 1, 1, 2], [0], [0]>} : vector<2x8x8xbf16>, vector<2x8x8xbf16>, vector<2x8x8xf32> -> vector<2x8x8xf32>
    "tpu.trace_stop"() : () -> ()
    %60 = vector.shape_cast %59 : vector<2x8x8xf32> to vector<16x8xf32>
    %61 = vector.extract_strided_slice %11 {offsets = [0, 16], sizes = [16, 8], strides = [1, 1]} : vector<16x96xf32> to vector<16x8xf32>
    %62 = vector.shape_cast %61 : vector<16x8xf32> to vector<2x8x8xf32>
    %63 = vector.extract_strided_slice %11 {offsets = [0, 48], sizes = [16, 8], strides = [1, 1]} : vector<16x96xf32> to vector<16x8xf32>
    %64 = vector.shape_cast %63 : vector<16x8xf32> to vector<2x8x8xf32>
    %65 = vector.extract_strided_slice %11 {offsets = [0, 80], sizes = [16, 8], strides = [1, 1]} : vector<16x96xf32> to vector<16x8xf32>
    %66 = vector.shape_cast %65 : vector<16x8xf32> to vector<2x8x8xf32>
    %67 = arith.truncf %62 : vector<2x8x8xf32> to vector<2x8x8xbf16>
    %68 = arith.truncf %64 : vector<2x8x8xf32> to vector<2x8x8xbf16>
    "tpu.trace_start"() <{level = 10 : i32, message = "bqd,bkd->bqk"}> : () -> ()
    %cst_19 = arith.constant dense<0.000000e+00> : vector<2x8x8xf32>
    %69 = tpu.matmul %67, %68, %cst_19 {dimension_numbers = #tpu.dot_dimension_numbers<[2], [2], [1], [1], [0, 0, 0, 1, 1, 1], [0], [0]>} : vector<2x8x8xbf16>, vector<2x8x8xbf16>, vector<2x8x8xf32> -> vector<2x8x8xf32>
    "tpu.trace_stop"() : () -> ()
    %70 = arith.addf %69, %12 : vector<2x8x8xf32>
    %cst_20 = arith.constant dense<0xFF800000> : vector<2x8xf32>
    %71 = vector.multi_reduction <maximumf>, %70, %cst_20 [2] : vector<2x8x8xf32> to vector<2x8xf32>
    %72 = vector.shape_cast %71 : vector<2x8xf32> to vector<2x8x1xf32>
    %73 = vector.broadcast %72 : vector<2x8x1xf32> to vector<2x8x8xf32>
    %74 = arith.subf %70, %73 : vector<2x8x8xf32>
    %75 = math.exp %74 : vector<2x8x8xf32>
    %cst_21 = arith.constant dense<0.000000e+00> : vector<2x8xf32>
    %76 = vector.multi_reduction <add>, %75, %cst_21 [2] : vector<2x8x8xf32> to vector<2x8xf32>
    %77 = vector.shape_cast %76 : vector<2x8xf32> to vector<2x8x1xf32>
    %78 = tpu.reciprocal %77 {approx = true} : vector<2x8x1xf32> -> vector<2x8x1xf32>
    %79 = vector.broadcast %78 : vector<2x8x1xf32> to vector<2x8x8xf32>
    %80 = arith.mulf %75, %79 : vector<2x8x8xf32>
    %81 = arith.truncf %80 : vector<2x8x8xf32> to vector<2x8x8xbf16>
    %82 = arith.truncf %66 : vector<2x8x8xf32> to vector<2x8x8xbf16>
    "tpu.trace_start"() <{level = 10 : i32, message = "bqk,bkd->bqd"}> : () -> ()
    %cst_22 = arith.constant dense<0.000000e+00> : vector<2x8x8xf32>
    %83 = tpu.matmul %81, %82, %cst_22 {dimension_numbers = #tpu.dot_dimension_numbers<[2], [1], [1], [2], [0, 0, 0, 1, 1, 2], [0], [0]>} : vector<2x8x8xbf16>, vector<2x8x8xbf16>, vector<2x8x8xf32> -> vector<2x8x8xf32>
    "tpu.trace_stop"() : () -> ()
    %84 = vector.shape_cast %83 : vector<2x8x8xf32> to vector<16x8xf32>
    %85 = vector.extract_strided_slice %11 {offsets = [0, 24], sizes = [16, 8], strides = [1, 1]} : vector<16x96xf32> to vector<16x8xf32>
    %86 = vector.shape_cast %85 : vector<16x8xf32> to vector<2x8x8xf32>
    %87 = vector.extract_strided_slice %11 {offsets = [0, 56], sizes = [16, 8], strides = [1, 1]} : vector<16x96xf32> to vector<16x8xf32>
    %88 = vector.shape_cast %87 : vector<16x8xf32> to vector<2x8x8xf32>
    %89 = vector.extract_strided_slice %11 {offsets = [0, 88], sizes = [16, 8], strides = [1, 1]} : vector<16x96xf32> to vector<16x8xf32>
    %90 = vector.shape_cast %89 : vector<16x8xf32> to vector<2x8x8xf32>
    %91 = arith.truncf %86 : vector<2x8x8xf32> to vector<2x8x8xbf16>
    %92 = arith.truncf %88 : vector<2x8x8xf32> to vector<2x8x8xbf16>
    "tpu.trace_start"() <{level = 10 : i32, message = "bqd,bkd->bqk"}> : () -> ()
    %cst_23 = arith.constant dense<0.000000e+00> : vector<2x8x8xf32>
    %93 = tpu.matmul %91, %92, %cst_23 {dimension_numbers = #tpu.dot_dimension_numbers<[2], [2], [1], [1], [0, 0, 0, 1, 1, 1], [0], [0]>} : vector<2x8x8xbf16>, vector<2x8x8xbf16>, vector<2x8x8xf32> -> vector<2x8x8xf32>
    "tpu.trace_stop"() : () -> ()
    %94 = arith.addf %93, %12 : vector<2x8x8xf32>
    %cst_24 = arith.constant dense<0xFF800000> : vector<2x8xf32>
    %95 = vector.multi_reduction <maximumf>, %94, %cst_24 [2] : vector<2x8x8xf32> to vector<2x8xf32>
    %96 = vector.shape_cast %95 : vector<2x8xf32> to vector<2x8x1xf32>
    %97 = vector.broadcast %96 : vector<2x8x1xf32> to vector<2x8x8xf32>
    %98 = arith.subf %94, %97 : vector<2x8x8xf32>
    %99 = math.exp %98 : vector<2x8x8xf32>
    %cst_25 = arith.constant dense<0.000000e+00> : vector<2x8xf32>
    %100 = vector.multi_reduction <add>, %99, %cst_25 [2] : vector<2x8x8xf32> to vector<2x8xf32>
    %101 = vector.shape_cast %100 : vector<2x8xf32> to vector<2x8x1xf32>
    %102 = tpu.reciprocal %101 {approx = true} : vector<2x8x1xf32> -> vector<2x8x1xf32>
    %103 = vector.broadcast %102 : vector<2x8x1xf32> to vector<2x8x8xf32>
    %104 = arith.mulf %99, %103 : vector<2x8x8xf32>
    %105 = arith.truncf %104 : vector<2x8x8xf32> to vector<2x8x8xbf16>
    %106 = arith.truncf %90 : vector<2x8x8xf32> to vector<2x8x8xbf16>
    "tpu.trace_start"() <{level = 10 : i32, message = "bqk,bkd->bqd"}> : () -> ()
    %cst_26 = arith.constant dense<0.000000e+00> : vector<2x8x8xf32>
    %107 = tpu.matmul %105, %106, %cst_26 {dimension_numbers = #tpu.dot_dimension_numbers<[2], [1], [1], [2], [0, 0, 0, 1, 1, 2], [0], [0]>} : vector<2x8x8xbf16>, vector<2x8x8xbf16>, vector<2x8x8xf32> -> vector<2x8x8xf32>
    "tpu.trace_stop"() : () -> ()
    %108 = vector.shape_cast %107 : vector<2x8x8xf32> to vector<16x8xf32>
    %109 = tpu.concatenate %36, %60, %84, %108 in 1 : vector<16x8xf32>, vector<16x8xf32>, vector<16x8xf32>, vector<16x8xf32> -> vector<16x32xf32>
    %110 = arith.truncf %109 : vector<16x32xf32> to vector<16x32xbf16>
    %c0_27 = arith.constant 0 : index
    %c0_28 = arith.constant 0 : index
    %c0_29 = arith.constant 0 : index
    %111 = vector.load %arg7[%c0_27, %c0_28, %c0_29] : memref<1x32x32xbf16, #tpu.memory_space<vmem>>, vector<1x32x32xbf16>
    %112 = vector.shape_cast %111 : vector<1x32x32xbf16> to vector<32x32xbf16>
    %cst_30 = arith.constant dense<0.000000e+00> : vector<16x32xf32>
    %113 = tpu.matmul %110, %112, %cst_30 {dimension_numbers = #tpu.dot_dimension_numbers<[1], [0], [0], [1], [0, 0, 1, 1], [], []>} : vector<16x32xbf16>, vector<32x32xbf16>, vector<16x32xf32> -> vector<16x32xf32>
    %c0_31 = arith.constant 0 : index
    %c0_32 = arith.constant 0 : index
    %c0_33 = arith.constant 0 : index
    %114 = vector.load %arg8[%c0_31, %c0_32, %c0_33] : memref<1x1x32xf32, #tpu.memory_space<vmem>>, vector<1x1x32xf32>
    %115 = vector.shape_cast %114 : vector<1x1x32xf32> to vector<1x32xf32>
    %116 = vector.broadcast %115 : vector<1x32xf32> to vector<16x32xf32>
    %117 = arith.addf %113, %116 : vector<16x32xf32>
    %118 = arith.addf %117, %3 : vector<16x32xf32>
    %c0_34 = arith.constant 0 : index
    %c0_35 = arith.constant 0 : index
    %c0_36 = arith.constant 0 : index
    %119 = vector.load %arg9[%c0_34, %c0_35, %c0_36] : memref<1x1x32xf32, #tpu.memory_space<vmem>>, vector<1x1x32xf32>
    %120 = vector.shape_cast %119 : vector<1x1x32xf32> to vector<1x32xf32>
    %c0_37 = arith.constant 0 : index
    %c0_38 = arith.constant 0 : index
    %c0_39 = arith.constant 0 : index
    %121 = vector.load %arg10[%c0_37, %c0_38, %c0_39] : memref<1x1x32xf32, #tpu.memory_space<vmem>>, vector<1x1x32xf32>
    %122 = vector.shape_cast %121 : vector<1x1x32xf32> to vector<1x32xf32>
    %cst_40 = arith.constant dense<0.000000e+00> : vector<16xf32>
    %123 = vector.multi_reduction <add>, %118, %cst_40 [1] : vector<16x32xf32> to vector<16xf32>
    %124 = vector.shape_cast %123 : vector<16xf32> to vector<16x1xf32>
    %cst_41 = arith.constant 3.200000e+01 : f32
    %125 = vector.broadcast %cst_41 : f32 to vector<16x1xf32>
    %126 = arith.divf %124, %125 : vector<16x1xf32>
    %127 = vector.broadcast %126 : vector<16x1xf32> to vector<16x32xf32>
    %128 = arith.subf %118, %127 : vector<16x32xf32>
    %129 = arith.mulf %128, %128 : vector<16x32xf32>
    %cst_42 = arith.constant dense<0.000000e+00> : vector<16xf32>
    %130 = vector.multi_reduction <add>, %129, %cst_42 [1] : vector<16x32xf32> to vector<16xf32>
    %131 = vector.shape_cast %130 : vector<16xf32> to vector<16x1xf32>
    %cst_43 = arith.constant 3.200000e+01 : f32
    %132 = vector.broadcast %cst_43 : f32 to vector<16x1xf32>
    %133 = arith.divf %131, %132 : vector<16x1xf32>
    %134 = vector.broadcast %126 : vector<16x1xf32> to vector<16x32xf32>
    %135 = arith.subf %118, %134 : vector<16x32xf32>
    %cst_44 = arith.constant 9.99999996E-13 : f32
    %136 = vector.broadcast %cst_44 : f32 to vector<16x1xf32>
    %137 = arith.addf %133, %136 : vector<16x1xf32>
    %138 = math.rsqrt %137 : vector<16x1xf32>
    %139 = vector.broadcast %138 : vector<16x1xf32> to vector<16x32xf32>
    %140 = arith.mulf %135, %139 : vector<16x32xf32>
    %141 = vector.broadcast %120 : vector<1x32xf32> to vector<16x32xf32>
    %142 = arith.mulf %140, %141 : vector<16x32xf32>
    %143 = vector.broadcast %122 : vector<1x32xf32> to vector<16x32xf32>
    %144 = arith.addf %142, %143 : vector<16x32xf32>
    %145 = arith.truncf %144 : vector<16x32xf32> to vector<16x32xbf16>
    %c0_45 = arith.constant 0 : index
    %c0_46 = arith.constant 0 : index
    %c0_47 = arith.constant 0 : index
    %146 = vector.load %arg11[%c0_45, %c0_46, %c0_47] : memref<1x32x64xbf16, #tpu.memory_space<vmem>>, vector<1x32x64xbf16>
    %147 = vector.shape_cast %146 : vector<1x32x64xbf16> to vector<32x64xbf16>
    %cst_48 = arith.constant dense<0.000000e+00> : vector<16x64xf32>
    %148 = tpu.matmul %145, %147, %cst_48 {dimension_numbers = #tpu.dot_dimension_numbers<[1], [0], [0], [1], [0, 0, 1, 1], [], []>} : vector<16x32xbf16>, vector<32x64xbf16>, vector<16x64xf32> -> vector<16x64xf32>
    %c0_49 = arith.constant 0 : index
    %c0_50 = arith.constant 0 : index
    %c0_51 = arith.constant 0 : index
    %149 = vector.load %arg12[%c0_49, %c0_50, %c0_51] : memref<1x1x64xf32, #tpu.memory_space<vmem>>, vector<1x1x64xf32>
    %150 = vector.shape_cast %149 : vector<1x1x64xf32> to vector<1x64xf32>
    %151 = vector.broadcast %150 : vector<1x64xf32> to vector<16x64xf32>
    %152 = arith.addf %148, %151 : vector<16x64xf32>
    %cst_52 = arith.constant 5.000000e-01 : f32
    %153 = vector.broadcast %cst_52 : f32 to vector<16x64xf32>
    %154 = arith.mulf %153, %152 : vector<16x64xf32>
    %cst_53 = arith.constant 4.471500e-02 : f32
    %155 = vector.broadcast %cst_53 : f32 to vector<16x64xf32>
    %156 = arith.mulf %155, %152 : vector<16x64xf32>
    %157 = arith.mulf %156, %152 : vector<16x64xf32>
    %158 = arith.mulf %157, %152 : vector<16x64xf32>
    %159 = arith.addf %152, %158 : vector<16x64xf32>
    %cst_54 = arith.constant 0.797884583 : f32
    %160 = vector.broadcast %cst_54 : f32 to vector<16x64xf32>
    %161 = arith.mulf %160, %159 : vector<16x64xf32>
    %162 = math.tanh %161 : vector<16x64xf32>
    %cst_55 = arith.constant 1.000000e+00 : f32
    %163 = vector.broadcast %cst_55 : f32 to vector<16x64xf32>
    %164 = arith.addf %163, %162 : vector<16x64xf32>
    %165 = arith.mulf %154, %164 : vector<16x64xf32>
    %166 = arith.truncf %165 : vector<16x64xf32> to vector<16x64xbf16>
    %c0_56 = arith.constant 0 : index
    %c0_57 = arith.constant 0 : index
    %c0_58 = arith.constant 0 : index
    %167 = vector.load %arg13[%c0_56, %c0_57, %c0_58] : memref<1x64x32xbf16, #tpu.memory_space<vmem>>, vector<1x64x32xbf16>
    %168 = vector.shape_cast %167 : vector<1x64x32xbf16> to vector<64x32xbf16>
    %cst_59 = arith.constant dense<0.000000e+00> : vector<16x32xf32>
    %169 = tpu.matmul %166, %168, %cst_59 {dimension_numbers = #tpu.dot_dimension_numbers<[1], [0], [0], [1], [0, 0, 1, 1], [], []>} : vector<16x64xbf16>, vector<64x32xbf16>, vector<16x32xf32> -> vector<16x32xf32>
    %c0_60 = arith.constant 0 : index
    %c0_61 = arith.constant 0 : index
    %c0_62 = arith.constant 0 : index
    %170 = vector.load %arg14[%c0_60, %c0_61, %c0_62] : memref<1x1x32xf32, #tpu.memory_space<vmem>>, vector<1x1x32xf32>
    %171 = vector.shape_cast %170 : vector<1x1x32xf32> to vector<1x32xf32>
    %172 = vector.broadcast %171 : vector<1x32xf32> to vector<16x32xf32>
    %173 = arith.addf %169, %172 : vector<16x32xf32>
    %174 = arith.addf %173, %144 : vector<16x32xf32>
    %c0_63 = arith.constant 0 : index
    %c0_64 = arith.constant 0 : index
    %c0_65 = arith.constant 0 : index
    %175 = vector.load %arg15[%c0_63, %c0_64, %c0_65] : memref<1x1x32xf32, #tpu.memory_space<vmem>>, vector<1x1x32xf32>
    %176 = vector.shape_cast %175 : vector<1x1x32xf32> to vector<1x32xf32>
    %c0_66 = arith.constant 0 : index
    %c0_67 = arith.constant 0 : index
    %c0_68 = arith.constant 0 : index
    %177 = vector.load %arg16[%c0_66, %c0_67, %c0_68] : memref<1x1x32xf32, #tpu.memory_space<vmem>>, vector<1x1x32xf32>
    %178 = vector.shape_cast %177 : vector<1x1x32xf32> to vector<1x32xf32>
    %cst_69 = arith.constant dense<0.000000e+00> : vector<16xf32>
    %179 = vector.multi_reduction <add>, %174, %cst_69 [1] : vector<16x32xf32> to vector<16xf32>
    %180 = vector.shape_cast %179 : vector<16xf32> to vector<16x1xf32>
    %cst_70 = arith.constant 3.200000e+01 : f32
    %181 = vector.broadcast %cst_70 : f32 to vector<16x1xf32>
    %182 = arith.divf %180, %181 : vector<16x1xf32>
    %183 = vector.broadcast %182 : vector<16x1xf32> to vector<16x32xf32>
    %184 = arith.subf %174, %183 : vector<16x32xf32>
    %185 = arith.mulf %184, %184 : vector<16x32xf32>
    %cst_71 = arith.constant dense<0.000000e+00> : vector<16xf32>
    %186 = vector.multi_reduction <add>, %185, %cst_71 [1] : vector<16x32xf32> to vector<16xf32>
    %187 = vector.shape_cast %186 : vector<16xf32> to vector<16x1xf32>
    %cst_72 = arith.constant 3.200000e+01 : f32
    %188 = vector.broadcast %cst_72 : f32 to vector<16x1xf32>
    %189 = arith.divf %187, %188 : vector<16x1xf32>
    %190 = vector.broadcast %182 : vector<16x1xf32> to vector<16x32xf32>
    %191 = arith.subf %174, %190 : vector<16x32xf32>
    %cst_73 = arith.constant 9.99999996E-13 : f32
    %192 = vector.broadcast %cst_73 : f32 to vector<16x1xf32>
    %193 = arith.addf %189, %192 : vector<16x1xf32>
    %194 = math.rsqrt %193 : vector<16x1xf32>
    %195 = vector.broadcast %194 : vector<16x1xf32> to vector<16x32xf32>
    %196 = arith.mulf %191, %195 : vector<16x32xf32>
    %197 = vector.broadcast %176 : vector<1x32xf32> to vector<16x32xf32>
    %198 = arith.mulf %196, %197 : vector<16x32xf32>
    %199 = vector.broadcast %178 : vector<1x32xf32> to vector<16x32xf32>
    %200 = arith.addf %198, %199 : vector<16x32xf32>
    %c0_74 = arith.constant 0 : index
    %c0_75 = arith.constant 0 : index
    %201 = vector.load %arg20[%c0_74, %c0_75] : memref<16x32xf32, #tpu.memory_space<vmem>>, vector<16x32xf32>
    tpu.vector_store %arg20[%c0_74, %c0_75], %200 {strides = array<i32>} : memref<16x32xf32, #tpu.memory_space<vmem>>, vector<16x32xf32>,
    %c1_i32 = arith.constant 1 : i32
    %202 = arith.cmpi eq, %arg0, %c1_i32 : i32
    %203 = arith.extui %202 : i1 to i32
    %c0_i32_76 = arith.constant 0 : i32
    %204 = arith.cmpi ne, %203, %c0_i32_76 : i32
    scf.if %204 {
      %205 = vector.shape_cast %200 : vector<16x32xf32> to vector<2x8x32xf32>
      %206 = vector.extract_strided_slice %205 {offsets = [0, 0, 0], sizes = [2, 1, 32], strides = [1, 1, 1]} : vector<2x8x32xf32> to vector<2x1x32xf32>
      %207 = vector.shape_cast %206 : vector<2x1x32xf32> to vector<2x32xf32>
      %208 = arith.truncf %207 : vector<2x32xf32> to vector<2x32xbf16>
      %c0_77 = arith.constant 0 : index
      %c0_78 = arith.constant 0 : index
      %209 = vector.load %arg17[%c0_77, %c0_78] : memref<32x512xbf16, #tpu.memory_space<vmem>>, vector<32x512xbf16>
      %cst_79 = arith.constant dense<0.000000e+00> : vector<2x512xf32>
      %210 = tpu.matmul %208, %209, %cst_79 {dimension_numbers = #tpu.dot_dimension_numbers<[1], [0], [0], [1], [0, 0, 1, 1], [], []>} : vector<2x32xbf16>, vector<32x512xbf16>, vector<2x512xf32> -> vector<2x512xf32>
      %c0_80 = arith.constant 0 : index
      %c0_81 = arith.constant 0 : index
      %211 = vector.load %arg18[%c0_80, %c0_81] : memref<1x512xf32, #tpu.memory_space<vmem>>, vector<1x512xf32>
      %212 = vector.broadcast %211 : vector<1x512xf32> to vector<2x512xf32>
      %213 = arith.addf %210, %212 : vector<2x512xf32>
      %c0_82 = arith.constant 0 : index
      %c0_83 = arith.constant 0 : index
      %214 = vector.load %arg19[%c0_82, %c0_83] : memref<2x512xf32, #tpu.memory_space<vmem>>, vector<2x512xf32>
      tpu.vector_store %arg19[%c0_82, %c0_83], %213 {strides = array<i32>} : memref<2x512xf32, #tpu.memory_space<vmem>>, vector<2x512xf32>,
    } else {
    }
    return
  }
  func.func @transform_0(%arg0: i32) -> (i32, i32) {
    %c0_i32 = arith.constant 0 : i32
    %c0_i32_0 = arith.constant 0 : i32
    %c0_i32_1 = arith.constant 0 : i32
    return %c0_i32, %c0_i32_0 : i32, i32
  }
  func.func @transform_1(%arg0: i32) -> (i32, i32, i32) {
    %c0_i32 = arith.constant 0 : i32
    %c0_i32_0 = arith.constant 0 : i32
    %c0_i32_1 = arith.constant 0 : i32
    %c0_i32_2 = arith.constant 0 : i32
    return %c0_i32, %c0_i32_0, %c0_i32_1 : i32, i32, i32
  }
  func.func @transform_2(%arg0: i32) -> (i32, i32) {
    %c0_i32 = arith.constant 0 : i32
    %c0_i32_0 = arith.constant 0 : i32
    %c0_i32_1 = arith.constant 0 : i32
    return %c0_i32, %c0_i32_0 : i32, i32
  }
  func.func @transform_3(%arg0: i32) -> (i32, i32) {
    %c0_i32 = arith.constant 0 : i32
    %c0_i32_0 = arith.constant 0 : i32
    %c0_i32_1 = arith.constant 0 : i32
    return %c0_i32, %c0_i32_0 : i32, i32
  }
  func.func @transform_4(%arg0: i32) -> (i32, i32, i32) {
    %c0_i32 = arith.constant 0 : i32
    %c0_i32_0 = arith.constant 0 : i32
    %c0_i32_1 = arith.constant 0 : i32
    return %arg0, %c0_i32, %c0_i32_0 : i32, i32, i32
  }
  func.func @transform_5(%arg0: i32) -> (i32, i32, i32) {
    %c0_i32 = arith.constant 0 : i32
    %c0_i32_0 = arith.constant 0 : i32
    %c0_i32_1 = arith.constant 0 : i32
    return %arg0, %c0_i32, %c0_i32_0 : i32, i32, i32
  }
  func.func @transform_6(%arg0: i32) -> (i32, i32, i32) {
    %c0_i32 = arith.constant 0 : i32
    %c0_i32_0 = arith.constant 0 : i32
    %c0_i32_1 = arith.constant 0 : i32
    return %arg0, %c0_i32, %c0_i32_0 : i32, i32, i32
  }
  func.func @transform_7(%arg0: i32) -> (i32, i32, i32) {
    %c0_i32 = arith.constant 0 : i32
    %c0_i32_0 = arith.constant 0 : i32
    %c0_i32_1 = arith.constant 0 : i32
    return %arg0, %c0_i32, %c0_i32_0 : i32, i32, i32
  }
  func.func @transform_8(%arg0: i32) -> (i32, i32, i32) {
    %c0_i32 = arith.constant 0 : i32
    %c0_i32_0 = arith.constant 0 : i32
    %c0_i32_1 = arith.constant 0 : i32
    return %arg0, %c0_i32, %c0_i32_0 : i32, i32, i32
  }
  func.func @transform_9(%arg0: i32) -> (i32, i32, i32) {
    %c0_i32 = arith.constant 0 : i32
    %c0_i32_0 = arith.constant 0 : i32
    %c0_i32_1 = arith.constant 0 : i32
    return %arg0, %c0_i32, %c0_i32_0 : i32, i32, i32
  }
  func.func @transform_10(%arg0: i32) -> (i32, i32, i32) {
    %c0_i32 = arith.constant 0 : i32
    %c0_i32_0 = arith.constant 0 : i32
    %c0_i32_1 = arith.constant 0 : i32
    return %arg0, %c0_i32, %c0_i32_0 : i32, i32, i32
  }
  func.func @transform_11(%arg0: i32) -> (i32, i32, i32) {
    %c0_i32 = arith.constant 0 : i32
    %c0_i32_0 = arith.constant 0 : i32
    %c0_i32_1 = arith.constant 0 : i32
    return %arg0, %c0_i32, %c0_i32_0 : i32, i32, i32
  }
  func.func @transform_12(%arg0: i32) -> (i32, i32, i32) {
    %c0_i32 = arith.constant 0 : i32
    %c0_i32_0 = arith.constant 0 : i32
    %c0_i32_1 = arith.constant 0 : i32
    return %arg0, %c0_i32, %c0_i32_0 : i32, i32, i32
  }
  func.func @transform_13(%arg0: i32) -> (i32, i32, i32) {
    %c0_i32 = arith.constant 0 : i32
    %c0_i32_0 = arith.constant 0 : i32
    %c0_i32_1 = arith.constant 0 : i32
    return %arg0, %c0_i32, %c0_i32_0 : i32, i32, i32
  }
  func.func @transform_14(%arg0: i32) -> (i32, i32, i32) {
    %c0_i32 = arith.constant 0 : i32
    %c0_i32_0 = arith.constant 0 : i32
    %c0_i32_1 = arith.constant 0 : i32
    return %arg0, %c0_i32, %c0_i32_0 : i32, i32, i32
  }
  func.func @transform_15(%arg0: i32) -> (i32, i32, i32) {
    %c0_i32 = arith.constant 0 : i32
    %c0_i32_0 = arith.constant 0 : i32
    %c0_i32_1 = arith.constant 0 : i32
    return %arg0, %c0_i32, %c0_i32_0 : i32, i32, i32
  }
  func.func @transform_16(%arg0: i32) -> (i32, i32) {
    %c0_i32 = arith.constant 0 : i32
    %c0_i32_0 = arith.constant 0 : i32
    %c0_i32_1 = arith.constant 0 : i32
    return %c0_i32, %c0_i32_0 : i32, i32
  }
  func.func @transform_17(%arg0: i32) -> (i32, i32) {
    %c0_i32 = arith.constant 0 : i32
    %c0_i32_0 = arith.constant 0 : i32
    %c0_i32_1 = arith.constant 0 : i32
    return %c0_i32, %c0_i32_0 : i32, i32
  }
  func.func @transform_18(%arg0: i32) -> (i32, i32) {
    %c0_i32 = arith.constant 0 : i32
    %c0_i32_0 = arith.constant 0 : i32
    %c0_i32_1 = arith.constant 0 : i32
    return %c0_i32, %c0_i32_0 : i32, i32
  }
}

</mosaic_0001>

<llo_original>
// kernel: text_model_forward.1
$region0: #{text_model_forward.1}
  #allocation0 [shape = 'u32[]', space=smem, size = 0x4, offset = 0x4, fixed_abs, tag = 'smem constant byte address 0x4 - core index']
  #allocation1 [shape = 'u32[72,128]{1,0:T(1,128)}', space=vmem, size = 0x9000, scoped, tag = 'internal scratch']
  #allocation2 [shape = 'f32[16,32]{1,0:T(8,128)}', space=vmem, size = 0x2000, scoped, tag = 'scratch operand']
  %s0 = inlined_call_operand.vmem [shape: f32[16,32], index: 0, kind: input, shape index: {}]
  %s1 = inlined_call_operand.vmem [shape: f32[2,8,8], index: 1, kind: input, shape index: {}]
  %s2 = inlined_call_operand.vmem [shape: f32[1,32], index: 2, kind: input, shape index: {}]
  %s3 = inlined_call_operand.vmem [shape: f32[1,32], index: 3, kind: input, shape index: {}]
  %s4 = inlined_call_operand.vmem [shape: bf16[2,32,96], index: 4, kind: input, shape index: {}]
  %s5 = inlined_call_operand.vmem [shape: f32[2,1,96], index: 5, kind: input, shape index: {}]
  %s6 = inlined_call_operand.vmem [shape: bf16[2,32,32], index: 6, kind: input, shape index: {}]
  %s7 = inlined_call_operand.vmem [shape: f32[2,1,32], index: 7, kind: input, shape index: {}]
  %s8 = inlined_call_operand.vmem [shape: f32[2,1,32], index: 8, kind: input, shape index: {}]
  %s9 = inlined_call_operand.vmem [shape: f32[2,1,32], index: 9, kind: input, shape index: {}]
  %s10 = inlined_call_operand.vmem [shape: bf16[2,32,64], index: 10, kind: input, shape index: {}]
  %s11 = inlined_call_operand.vmem [shape: f32[2,1,64], index: 11, kind: input, shape index: {}]
  %s12 = inlined_call_operand.vmem [shape: bf16[2,64,32], index: 12, kind: input, shape index: {}]
  %s13 = inlined_call_operand.vmem [shape: f32[2,1,32], index: 13, kind: input, shape index: {}]
  %s14 = inlined_call_operand.vmem [shape: f32[2,1,32], index: 14, kind: input, shape index: {}]
  %s15 = inlined_call_operand.vmem [shape: f32[2,1,32], index: 15, kind: input, shape index: {}]
  %s16 = inlined_call_operand.vmem [shape: bf16[32,512], index: 16, kind: input, shape index: {}]
  %s17 = inlined_call_operand.vmem [shape: f32[1,512], index: 17, kind: input, shape index: {}]
  %s18 = inlined_call_operand.hbm [shape: f32[2,512], index: 18, kind: output, shape index: {}]
  %s19 = sld [smem:[#allocation0]]
  $region113: #{text_model_forward.1} parent=0
    _
  %s21 = ssub.s32 1, %s19
  %s22 = scalar_select 0, %s21, %s19
  $region1: #{text_model_forward.1} parent=0
    #allocation3 [shape = 'u8[4096]{0}', space=vmem, size = 0x1000, scoped, tag = 'output window, operand 0, single buffered']
    #allocation4 [shape = 's32[2]{0}', space=sflag, size = 0x8, scoped, tag = 'scoped memory for text_model_forward.1']
    %23 = vsyncpa [#allocation4], 0
    loop: start=0, step=1, limit=4
    $region2: #{text_model_forward.1} parent=1 // loop_pre_header
      _
    $region3: #{text_model_forward.1} parent=1 // loop_header
      %s25 = sphi 0, %s29
      %p26 = scmp.ge.s32.totalorder %s25, 4
      %s33 = sphi 0, %s33
      %s35 = sphi 0, %s33
      %s36 = sphi 0, %s35
      %s50 = sphi 0, %s36
      %s54 = sphi 0, %s54
      %s56 = sphi 0, %s54
      %s57 = sphi 0, %s56
      %s71 = sphi 0, %s57
      %s75 = sphi 0, %s75
      %s77 = sphi 0, %s75
      %s78 = sphi 0, %s77
      %s92 = sphi 0, %s78
      %s96 = sphi 0, %s96
      %s98 = sphi 0, %s96
      %s99 = sphi 0, %s98
      %s113 = sphi 0, %s99
      %s119 = sphi 0, %s121
      %s122 = sphi 0, %s119
      %s123 = sphi 0, %s122
      %s139 = sphi 0, %s123
      %s145 = sphi 0, %s147
      %s148 = sphi 0, %s145
      %s149 = sphi 0, %s148
      %s165 = sphi 0, %s149
      %s171 = sphi 0, %s173
      %s174 = sphi 0, %s171
      %s175 = sphi 0, %s174
      %s191 = sphi 0, %s175
      %s197 = sphi 0, %s199
      %s200 = sphi 0, %s197
      %s201 = sphi 0, %s200
      %s217 = sphi 0, %s201
      %s223 = sphi 0, %s225
      %s226 = sphi 0, %s223
      %s227 = sphi 0, %s226
      %s243 = sphi 0, %s227
      %s249 = sphi 0, %s251
      %s252 = sphi 0, %s249
      %s253 = sphi 0, %s252
      %s269 = sphi 0, %s253
      %s275 = sphi 0, %s277
      %s278 = sphi 0, %s275
      %s279 = sphi 0, %s278
      %s295 = sphi 0, %s279
      %s301 = sphi 0, %s303
      %s304 = sphi 0, %s301
      %s305 = sphi 0, %s304
      %s321 = sphi 0, %s305
      %s327 = sphi 0, %s329
      %s330 = sphi 0, %s327
      %s331 = sphi 0, %s330
      %s347 = sphi 0, %s331
      %s353 = sphi 0, %s355
      %s356 = sphi 0, %s353
      %s357 = sphi 0, %s356
      %s373 = sphi 0, %s357
      %s379 = sphi 0, %s381
      %s382 = sphi 0, %s379
      %s383 = sphi 0, %s382
      %s399 = sphi 0, %s383
      %s405 = sphi 0, %s407
      %s408 = sphi 0, %s405
      %s409 = sphi 0, %s408
      %s425 = sphi 0, %s409
      %s429 = sphi 0, %s429
      %s431 = sphi 0, %s429
      %s432 = sphi 0, %s431
      %s446 = sphi 0, %s432
      %s450 = sphi 0, %s450
      %s452 = sphi 0, %s450
      %s453 = sphi 0, %s452
      %s467 = sphi 0, %s453
      %s471 = sphi 0, %s471
      %s473 = sphi 0, %s471
      %s474 = sphi 0, %s473
      %s488 = sphi 0, %s474
    $region4: #{text_model_forward.1} parent=1 // loop_header_branch
      %28 = sbr.rel (%p26) target = $region8
    $region5: #{text_model_forward.1} parent=1 // loop_body
      %s30 = ssub.s32 %s25, 1
      %s31 = ssub.s32 %s25, 2
      %s32 = sadd.s32 %s25, 1
      %s34 = sadd.s32 %s33, 1
      %p37 = scmp.eq.s32.totalorder %s25, 1
      %p38 = scmp.ne.s32.totalorder %s33, %s35
      %p39 = scmp.eq.s32.totalorder %s25, 0
      %p40 = por %p38, %p39
      %p41 = scmp.ne.s32.totalorder %s33, %s35
      %p42 = scmp.eq.s32.totalorder %s30, 1
      %p43 = por %p41, %p42
      %p44 = scmp.ne.s32.totalorder %s35, %s36
      %p45 = scmp.eq.s32.totalorder %s30, 0
      %p46 = por %p44, %p45
      %p47 = scmp.ne.s32.totalorder %s35, %s36
      %p48 = scmp.eq.s32.totalorder %s31, 1
      %p49 = por %p47, %p48
      %p51 = scmp.ne.s32.totalorder %s36, %s50
      %p52 = scmp.eq.s32.totalorder %s31, 0
      %p53 = por %p51, %p52
      %s55 = sadd.s32 %s54, 1
      %p58 = scmp.eq.s32.totalorder %s25, 1
      %p59 = scmp.ne.s32.totalorder %s54, %s56
      %p60 = scmp.eq.s32.totalorder %s25, 0
      %p61 = por %p59, %p60
      %p62 = scmp.ne.s32.totalorder %s54, %s56
      %p63 = scmp.eq.s32.totalorder %s30, 1
      %p64 = por %p62, %p63
      %p65 = scmp.ne.s32.totalorder %s56, %s57
      %p66 = scmp.eq.s32.totalorder %s30, 0
      %p67 = por %p65, %p66
      %p68 = scmp.ne.s32.totalorder %s56, %s57
      %p69 = scmp.eq.s32.totalorder %s31, 1
      %p70 = por %p68, %p69
      %p72 = scmp.ne.s32.totalorder %s57, %s71
      %p73 = scmp.eq.s32.totalorder %s31, 0
      %p74 = por %p72, %p73
      %s76 = sadd.s32 %s75, 1
      %p79 = scmp.eq.s32.totalorder %s25, 1
      %p80 = scmp.ne.s32.totalorder %s75, %s77
      %p81 = scmp.eq.s32.totalorder %s25, 0
      %p82 = por %p80, %p81
      %p83 = scmp.ne.s32.totalorder %s75, %s77
      %p84 = scmp.eq.s32.totalorder %s30, 1
      %p85 = por %p83, %p84
      %p86 = scmp.ne.s32.totalorder %s77, %s78
      %p87 = scmp.eq.s32.totalorder %s30, 0
      %p88 = por %p86, %p87
      %p89 = scmp.ne.s32.totalorder %s77, %s78
      %p90 = scmp.eq.s32.totalorder %s31, 1
      %p91 = por %p89, %p90
      %p93 = scmp.ne.s32.totalorder %s78, %s92
      %p94 = scmp.eq.s32.totalorder %s31, 0
      %p95 = por %p93, %p94
      %s97 = sadd.s32 %s96, 1
      %p100 = scmp.eq.s32.totalorder %s25, 1
      %p101 = scmp.ne.s32.totalorder %s96, %s98
      %p102 = scmp.eq.s32.totalorder %s25, 0
      %p103 = por %p101, %p102
      %p104 = scmp.ne.s32.totalorder %s96, %s98
      %p105 = scmp.eq.s32.totalorder %s30, 1
      %p106 = por %p104, %p105
      %p107 = scmp.ne.s32.totalorder %s98, %s99
      %p108 = scmp.eq.s32.totalorder %s30, 0
      %p109 = por %p107, %p108
      %p110 = scmp.ne.s32.totalorder %s98, %s99
      %p111 = scmp.eq.s32.totalorder %s31, 1
      %p112 = por %p110, %p111
      %p114 = scmp.ne.s32.totalorder %s99, %s113
      %p115 = scmp.eq.s32.totalorder %s31, 0
      %p116 = por %p114, %p115
      %s117 = ssub.s32 %s25, %s32
      %p118 = scmp.eq.s32.totalorder %s117, 0
      %s120 = sadd.s32 %s119, 1
      %s121 = scalar_select %p118, %s119, %s120
      %p124 = pneg %p118
      %p125 = scmp.eq.s32.totalorder %s25, 1
      %p126 = por %p124, %p125
      %p127 = scmp.ne.s32.totalorder %s119, %s122
      %p128 = scmp.eq.s32.totalorder %s25, 0
      %p129 = por %p127, %p128
      %p130 = scmp.ne.s32.totalorder %s119, %s122
      %p131 = scmp.eq.s32.totalorder %s30, 1
      %p132 = por %p130, %p131
      %p133 = scmp.ne.s32.totalorder %s122, %s123
      %p134 = scmp.eq.s32.totalorder %s30, 0
      %p135 = por %p133, %p134
      %p136 = scmp.ne.s32.totalorder %s122, %s123
      %p137 = scmp.eq.s32.totalorder %s31, 1
      %p138 = por %p136, %p137
      %p140 = scmp.ne.s32.totalorder %s123, %s139
      %p141 = scmp.eq.s32.totalorder %s31, 0
      %p142 = por %p140, %p141
      %s143 = ssub.s32 %s25, %s32
      %p144 = scmp.eq.s32.totalorder %s143, 0
      %s146 = sadd.s32 %s145, 1
      %s147 = scalar_select %p144, %s145, %s146
      %p150 = pneg %p144
      %p151 = scmp.eq.s32.totalorder %s25, 1
      %p152 = por %p150, %p151
      %p153 = scmp.ne.s32.totalorder %s145, %s148
      %p154 = scmp.eq.s32.totalorder %s25, 0
      %p155 = por %p153, %p154
      %p156 = scmp.ne.s32.totalorder %s145, %s148
      %p157 = scmp.eq.s32.totalorder %s30, 1
      %p158 = por %p156, %p157
      %p159 = scmp.ne.s32.totalorder %s148, %s149
      %p160 = scmp.eq.s32.totalorder %s30, 0
      %p161 = por %p159, %p160
      %p162 = scmp.ne.s32.totalorder %s148, %s149
      %p163 = scmp.eq.s32.totalorder %s31, 1
      %p164 = por %p162, %p163
      %p166 = scmp.ne.s32.totalorder %s149, %s165
      %p167 = scmp.eq.s32.totalorder %s31, 0
      %p168 = por %p166, %p167
      %s169 = ssub.s32 %s25, %s32
      %p170 = scmp.eq.s32.totalorder %s169, 0
      %s172 = sadd.s32 %s171, 1
      %s173 = scalar_select %p170, %s171, %s172
      %p176 = pneg %p170
      %p177 = scmp.eq.s32.totalorder %s25, 1
      %p178 = por %p176, %p177
      %p179 = scmp.ne.s32.totalorder %s171, %s174
      %p180 = scmp.eq.s32.totalorder %s25, 0
      %p181 = por %p179, %p180
      %p182 = scmp.ne.s32.totalorder %s171, %s174
      %p183 = scmp.eq.s32.totalorder %s30, 1
      %p184 = por %p182, %p183
      %p185 = scmp.ne.s32.totalorder %s174, %s175
      %p186 = scmp.eq.s32.totalorder %s30, 0
      %p187 = por %p185, %p186
      %p188 = scmp.ne.s32.totalorder %s174, %s175
      %p189 = scmp.eq.s32.totalorder %s31, 1
      %p190 = por %p188, %p189
      %p192 = scmp.ne.s32.totalorder %s175, %s191
      %p193 = scmp.eq.s32.totalorder %s31, 0
      %p194 = por %p192, %p193
      %s195 = ssub.s32 %s25, %s32
      %p196 = scmp.eq.s32.totalorder %s195, 0
      %s198 = sadd.s32 %s197, 1
      %s199 = scalar_select %p196, %s197, %s198
      %p202 = pneg %p196
      %p203 = scmp.eq.s32.totalorder %s25, 1
      %p204 = por %p202, %p203
      %p205 = scmp.ne.s32.totalorder %s197, %s200
      %p206 = scmp.eq.s32.totalorder %s25, 0
      %p207 = por %p205, %p206
      %p208 = scmp.ne.s32.totalorder %s197, %s200
      %p209 = scmp.eq.s32.totalorder %s30, 1
      %p210 = por %p208, %p209
      %p211 = scmp.ne.s32.totalorder %s200, %s201
      %p212 = scmp.eq.s32.totalorder %s30, 0
      %p213 = por %p211, %p212
      %p214 = scmp.ne.s32.totalorder %s200, %s201
      %p215 = scmp.eq.s32.totalorder %s31, 1
      %p216 = por %p214, %p215
      %p218 = scmp.ne.s32.totalorder %s201, %s217
      %p219 = scmp.eq.s32.totalorder %s31, 0
      %p220 = por %p218, %p219
      %s221 = ssub.s32 %s25, %s32
      %p222 = scmp.eq.s32.totalorder %s221, 0
      %s224 = sadd.s32 %s223, 1
      %s225 = scalar_select %p222, %s223, %s224
      %p228 = pneg %p222
      %p229 = scmp.eq.s32.totalorder %s25, 1
      %p230 = por %p228, %p229
      %p231 = scmp.ne.s32.totalorder %s223, %s226
      %p232 = scmp.eq.s32.totalorder %s25, 0
      %p233 = por %p231, %p232
      %p234 = scmp.ne.s32.totalorder %s223, %s226
      %p235 = scmp.eq.s32.totalorder %s30, 1
      %p236 = por %p234, %p235
      %p237 = scmp.ne.s32.totalorder %s226, %s227
      %p238 = scmp.eq.s32.totalorder %s30, 0
      %p239 = por %p237, %p238
      %p240 = scmp.ne.s32.totalorder %s226, %s227
      %p241 = scmp.eq.s32.totalorder %s31, 1
      %p242 = por %p240, %p241
      %p244 = scmp.ne.s32.totalorder %s227, %s243
      %p245 = scmp.eq.s32.totalorder %s31, 0
      %p246 = por %p244, %p245
      %s247 = ssub.s32 %s25, %s32
      %p248 = scmp.eq.s32.totalorder %s247, 0
      %s250 = sadd.s32 %s249, 1
      %s251 = scalar_select %p248, %s249, %s250
      %p254 = pneg %p248
      %p255 = scmp.eq.s32.totalorder %s25, 1
      %p256 = por %p254, %p255
      %p257 = scmp.ne.s32.totalorder %s249, %s252
      %p258 = scmp.eq.s32.totalorder %s25, 0
      %p259 = por %p257, %p258
      %p260 = scmp.ne.s32.totalorder %s249, %s252
      %p261 = scmp.eq.s32.totalorder %s30, 1
      %p262 = por %p260, %p261
      %p263 = scmp.ne.s32.totalorder %s252, %s253
      %p264 = scmp.eq.s32.totalorder %s30, 0
      %p265 = por %p263, %p264
      %p266 = scmp.ne.s32.totalorder %s252, %s253
      %p267 = scmp.eq.s32.totalorder %s31, 1
      %p268 = por %p266, %p267
      %p270 = scmp.ne.s32.totalorder %s253, %s269
      %p271 = scmp.eq.s32.totalorder %s31, 0
      %p272 = por %p270, %p271
      %s273 = ssub.s32 %s25, %s32
      %p274 = scmp.eq.s32.totalorder %s273, 0
      %s276 = sadd.s32 %s275, 1
      %s277 = scalar_select %p274, %s275, %s276
      %p280 = pneg %p274
      %p281 = scmp.eq.s32.totalorder %s25, 1
      %p282 = por %p280, %p281
      %p283 = scmp.ne.s32.totalorder %s275, %s278
      %p284 = scmp.eq.s32.totalorder %s25, 0
      %p285 = por %p283, %p284
      %p286 = scmp.ne.s32.totalorder %s275, %s278
      %p287 = scmp.eq.s32.totalorder %s30, 1
      %p288 = por %p286, %p287
      %p289 = scmp.ne.s32.totalorder %s278, %s279
      %p290 = scmp.eq.s32.totalorder %s30, 0
      %p291 = por %p289, %p290
      %p292 = scmp.ne.s32.totalorder %s278, %s279
      %p293 = scmp.eq.s32.totalorder %s31, 1
      %p294 = por %p292, %p293
      %p296 = scmp.ne.s32.totalorder %s279, %s295
      %p297 = scmp.eq.s32.totalorder %s31, 0
      %p298 = por %p296, %p297
      %s299 = ssub.s32 %s25, %s32
      %p300 = scmp.eq.s32.totalorder %s299, 0
      %s302 = sadd.s32 %s301, 1
      %s303 = scalar_select %p300, %s301, %s302
      %p306 = pneg %p300
      %p307 = scmp.eq.s32.totalorder %s25, 1
      %p308 = por %p306, %p307
      %p309 = scmp.ne.s32.totalorder %s301, %s304
      %p310 = scmp.eq.s32.totalorder %s25, 0
      %p311 = por %p309, %p310
      %p312 = scmp.ne.s32.totalorder %s301, %s304
      %p313 = scmp.eq.s32.totalorder %s30, 1
      %p314 = por %p312, %p313
      %p315 = scmp.ne.s32.totalorder %s304, %s305
      %p316 = scmp.eq.s32.totalorder %s30, 0
      %p317 = por %p315, %p316
      %p318 = scmp.ne.s32.totalorder %s304, %s305
      %p319 = scmp.eq.s32.totalorder %s31, 1
      %p320 = por %p318, %p319
      %p322 = scmp.ne.s32.totalorder %s305, %s321
      %p323 = scmp.eq.s32.totalorder %s31, 0
      %p324 = por %p322, %p323
      %s325 = ssub.s32 %s25, %s32
      %p326 = scmp.eq.s32.totalorder %s325, 0
      %s328 = sadd.s32 %s327, 1
      %s329 = scalar_select %p326, %s327, %s328
      %p332 = pneg %p326
      %p333 = scmp.eq.s32.totalorder %s25, 1
      %p334 = por %p332, %p333
      %p335 = scmp.ne.s32.totalorder %s327, %s330
      %p336 = scmp.eq.s32.totalorder %s25, 0
      %p337 = por %p335, %p336
      %p338 = scmp.ne.s32.totalorder %s327, %s330
      %p339 = scmp.eq.s32.totalorder %s30, 1
      %p340 = por %p338, %p339
      %p341 = scmp.ne.s32.totalorder %s330, %s331
      %p342 = scmp.eq.s32.totalorder %s30, 0
      %p343 = por %p341, %p342
      %p344 = scmp.ne.s32.totalorder %s330, %s331
      %p345 = scmp.eq.s32.totalorder %s31, 1
      %p346 = por %p344, %p345
      %p348 = scmp.ne.s32.totalorder %s331, %s347
      %p349 = scmp.eq.s32.totalorder %s31, 0
      %p350 = por %p348, %p349
      %s351 = ssub.s32 %s25, %s32
      %p352 = scmp.eq.s32.totalorder %s351, 0
      %s354 = sadd.s32 %s353, 1
      %s355 = scalar_select %p352, %s353, %s354
      %p358 = pneg %p352
      %p359 = scmp.eq.s32.totalorder %s25, 1
      %p360 = por %p358, %p359
      %p361 = scmp.ne.s32.totalorder %s353, %s356
      %p362 = scmp.eq.s32.totalorder %s25, 0
      %p363 = por %p361, %p362
      %p364 = scmp.ne.s32.totalorder %s353, %s356
      %p365 = scmp.eq.s32.totalorder %s30, 1
      %p366 = por %p364, %p365
      %p367 = scmp.ne.s32.totalorder %s356, %s357
      %p368 = scmp.eq.s32.totalorder %s30, 0
      %p369 = por %p367, %p368
      %p370 = scmp.ne.s32.totalorder %s356, %s357
      %p371 = scmp.eq.s32.totalorder %s31, 1
      %p372 = por %p370, %p371
      %p374 = scmp.ne.s32.totalorder %s357, %s373
      %p375 = scmp.eq.s32.totalorder %s31, 0
      %p376 = por %p374, %p375
      %s377 = ssub.s32 %s25, %s32
      %p378 = scmp.eq.s32.totalorder %s377, 0
      %s380 = sadd.s32 %s379, 1
      %s381 = scalar_select %p378, %s379, %s380
      %p384 = pneg %p378
      %p385 = scmp.eq.s32.totalorder %s25, 1
      %p386 = por %p384, %p385
      %p387 = scmp.ne.s32.totalorder %s379, %s382
      %p388 = scmp.eq.s32.totalorder %s25, 0
      %p389 = por %p387, %p388
      %p390 = scmp.ne.s32.totalorder %s379, %s382
      %p391 = scmp.eq.s32.totalorder %s30, 1
      %p392 = por %p390, %p391
      %p393 = scmp.ne.s32.totalorder %s382, %s383
      %p394 = scmp.eq.s32.totalorder %s30, 0
      %p395 = por %p393, %p394
      %p396 = scmp.ne.s32.totalorder %s382, %s383
      %p397 = scmp.eq.s32.totalorder %s31, 1
      %p398 = por %p396, %p397
      %p400 = scmp.ne.s32.totalorder %s383, %s399
      %p401 = scmp.eq.s32.totalorder %s31, 0
      %p402 = por %p400, %p401
      %s403 = ssub.s32 %s25, %s32
      %p404 = scmp.eq.s32.totalorder %s403, 0
      %s406 = sadd.s32 %s405, 1
      %s407 = scalar_select %p404, %s405, %s406
      %p410 = pneg %p404
      %p411 = scmp.eq.s32.totalorder %s25, 1
      %p412 = por %p410, %p411
      %p413 = scmp.ne.s32.totalorder %s405, %s408
      %p414 = scmp.eq.s32.totalorder %s25, 0
      %p415 = por %p413, %p414
      %p416 = scmp.ne.s32.totalorder %s405, %s408
      %p417 = scmp.eq.s32.totalorder %s30, 1
      %p418 = por %p416, %p417
      %p419 = scmp.ne.s32.totalorder %s408, %s409
      %p420 = scmp.eq.s32.totalorder %s30, 0
      %p421 = por %p419, %p420
      %p422 = scmp.ne.s32.totalorder %s408, %s409
      %p423 = scmp.eq.s32.totalorder %s31, 1
      %p424 = por %p422, %p423
      %p426 = scmp.ne.s32.totalorder %s409, %s425
      %p427 = scmp.eq.s32.totalorder %s31, 0
      %p428 = por %p426, %p427
      %s430 = sadd.s32 %s429, 1
      %p433 = scmp.eq.s32.totalorder %s25, 1
      %p434 = scmp.ne.s32.totalorder %s429, %s431
      %p435 = scmp.eq.s32.totalorder %s25, 0
      %p436 = por %p434, %p435
      %p437 = scmp.ne.s32.totalorder %s429, %s431
      %p438 = scmp.eq.s32.totalorder %s30, 1
      %p439 = por %p437, %p438
      %p440 = scmp.ne.s32.totalorder %s431, %s432
      %p441 = scmp.eq.s32.totalorder %s30, 0
      %p442 = por %p440, %p441
      %p443 = scmp.ne.s32.totalorder %s431, %s432
      %p444 = scmp.eq.s32.totalorder %s31, 1
      %p445 = por %p443, %p444
      %p447 = scmp.ne.s32.totalorder %s432, %s446
      %p448 = scmp.eq.s32.totalorder %s31, 0
      %p449 = por %p447, %p448
      %s451 = sadd.s32 %s450, 1
      %p454 = scmp.eq.s32.totalorder %s25, 1
      %p455 = scmp.ne.s32.totalorder %s450, %s452
      %p456 = scmp.eq.s32.totalorder %s25, 0
      %p457 = por %p455, %p456
      %p458 = scmp.ne.s32.totalorder %s450, %s452
      %p459 = scmp.eq.s32.totalorder %s30, 1
      %p460 = por %p458, %p459
      %p461 = scmp.ne.s32.totalorder %s452, %s453
      %p462 = scmp.eq.s32.totalorder %s30, 0
      %p463 = por %p461, %p462
      %p464 = scmp.ne.s32.totalorder %s452, %s453
      %p465 = scmp.eq.s32.totalorder %s31, 1
      %p466 = por %p464, %p465
      %p468 = scmp.ne.s32.totalorder %s453, %s467
      %p469 = scmp.eq.s32.totalorder %s31, 0
      %p470 = por %p468, %p469
      %s472 = sadd.s32 %s471, 1
      %p475 = scmp.eq.s32.totalorder %s25, 1
      %p476 = scmp.ne.s32.totalorder %s471, %s473
      %p477 = scmp.eq.s32.totalorder %s25, 0
      %p478 = por %p476, %p477
      %p479 = scmp.ne.s32.totalorder %s471, %s473
      %p480 = scmp.eq.s32.totalorder %s30, 1
      %p481 = por %p479, %p480
      %p482 = scmp.ne.s32.totalorder %s473, %s474
      %p483 = scmp.eq.s32.totalorder %s30, 0
      %p484 = por %p482, %p483
      %p485 = scmp.ne.s32.totalorder %s473, %s474
      %p486 = scmp.eq.s32.totalorder %s31, 1
      %p487 = por %p485, %p486
      %p489 = scmp.ne.s32.totalorder %s474, %s488
      %p490 = scmp.eq.s32.totalorder %s31, 0
      %p491 = por %p489, %p490
      %p492 = scmp.le.s32.totalorder 1, %s25
      %p493 = scmp.lt.s32.totalorder %s25, 3
      %p494 = pnand %p492, %p493
      %p495 = pneg %p494
      // Predicated region
      $region9: #{text_model_forward.1} parent=5 // pred_check
        _
      $region10: #{text_model_forward.1} parent=5 // pred_check_branch
        %497 = sbr.rel (%p494) target = $region12
      $region11: #{text_model_forward.1} parent=5 // pred_region
        %s498 = ssub.s32 %s25, 1
        // Predicated region
        $region13: #{text_model_forward.1} parent=11 // pred_check
          %p499 = pneg %p46
        $region14: #{text_model_forward.1} parent=11 // pred_check_branch
          %501 = sbr.rel (%p499) target = $region16
        $region15: #{text_model_forward.1} parent=11 // pred_region
          _
        $region16: #{text_model_forward.1} parent=11 // pred_fallthru
          _
        // Predicated region
        $region17: #{text_model_forward.1} parent=11 // pred_check
          %p502 = pneg %p67
        $region18: #{text_model_forward.1} parent=11 // pred_check_branch
          %504 = sbr.rel (%p502) target = $region20
        $region19: #{text_model_forward.1} parent=11 // pred_region
          _
        $region20: #{text_model_forward.1} parent=11 // pred_fallthru
          _
        // Predicated region
        $region21: #{text_model_forward.1} parent=11 // pred_check
          %p505 = pneg %p88
        $region22: #{text_model_forward.1} parent=11 // pred_check_branch
          %507 = sbr.rel (%p505) target = $region24
        $region23: #{text_model_forward.1} parent=11 // pred_region
          _
        $region24: #{text_model_forward.1} parent=11 // pred_fallthru
          _
        // Predicated region
        $region25: #{text_model_forward.1} parent=11 // pred_check
          %p508 = pneg %p109
        $region26: #{text_model_forward.1} parent=11 // pred_check_branch
          %510 = sbr.rel (%p508) target = $region28
        $region27: #{text_model_forward.1} parent=11 // pred_region
          _
        $region28: #{text_model_forward.1} parent=11 // pred_fallthru
          _
        // Predicated region
        $region29: #{text_model_forward.1} parent=11 // pred_check
          %p511 = pneg %p442
        $region30: #{text_model_forward.1} parent=11 // pred_check_branch
          %513 = sbr.rel (%p511) target = $region32
        $region31: #{text_model_forward.1} parent=11 // pred_region
          _
        $region32: #{text_model_forward.1} parent=11 // pred_fallthru
          _
        // Predicated region
        $region33: #{text_model_forward.1} parent=11 // pred_check
          %p514 = pneg %p463
        $region34: #{text_model_forward.1} parent=11 // pred_check_branch
          %516 = sbr.rel (%p514) target = $region36
        $region35: #{text_model_forward.1} parent=11 // pred_region
          _
        $region36: #{text_model_forward.1} parent=11 // pred_fallthru
          _
      $region12: #{text_model_forward.1} parent=5 // pred_fallthru
        _
      %p517 = scmp.lt.s32.totalorder %s25, 2
      // Predicated region
      $region37: #{text_model_forward.1} parent=5 // pred_check
        %p518 = pneg %p517
      $region38: #{text_model_forward.1} parent=5 // pred_check_branch
        %520 = sbr.rel (%p518) target = $region40
      $region39: #{text_model_forward.1} parent=5 // pred_region
        // Predicated region
        $region41: #{text_model_forward.1} parent=39 // pred_check
          %p521 = pneg %p129
        $region42: #{text_model_forward.1} parent=39 // pred_check_branch
          %523 = sbr.rel (%p521) target = $region44
        $region43: #{text_model_forward.1} parent=39 // pred_region
          %p524 = scmp.lt.s32.totalorder %s25, 1
          %s525 = scalar_select %p524, %s25, 1
          %s526 = smul.addr %s525, 4
          %s527 = smul.addr %s526, 4
          %s528 = scalar_lea.vmem %s4, %s527
        $region44: #{text_model_forward.1} parent=39 // pred_fallthru
          _
        // Predicated region
        $region45: #{text_model_forward.1} parent=39 // pred_check
          %p529 = pneg %p155
        $region46: #{text_model_forward.1} parent=39 // pred_check_branch
          %531 = sbr.rel (%p529) target = $region48
        $region47: #{text_model_forward.1} parent=39 // pred_region
          %p532 = scmp.lt.s32.totalorder %s25, 1
          %s533 = scalar_select %p532, %s25, 1
          %s534 = scalar_lea.vmem %s5, %s533
        $region48: #{text_model_forward.1} parent=39 // pred_fallthru
          _
        // Predicated region
        $region49: #{text_model_forward.1} parent=39 // pred_check
          %p535 = pneg %p181
        $region50: #{text_model_forward.1} parent=39 // pred_check_branch
          %537 = sbr.rel (%p535) target = $region52
        $region51: #{text_model_forward.1} parent=39 // pred_region
          %p538 = scmp.lt.s32.totalorder %s25, 1
          %s539 = scalar_select %p538, %s25, 1
          %s540 = smul.addr %s539, 4
          %s541 = smul.addr %s540, 4
          %s542 = scalar_lea.vmem %s6, %s541
        $region52: #{text_model_forward.1} parent=39 // pred_fallthru
          _
        // Predicated region
        $region53: #{text_model_forward.1} parent=39 // pred_check
          %p543 = pneg %p207
        $region54: #{text_model_forward.1} parent=39 // pred_check_branch
          %545 = sbr.rel (%p543) target = $region56
        $region55: #{text_model_forward.1} parent=39 // pred_region
          %p546 = scmp.lt.s32.totalorder %s25, 1
          %s547 = scalar_select %p546, %s25, 1
          %s548 = scalar_lea.vmem %s7, %s547
        $region56: #{text_model_forward.1} parent=39 // pred_fallthru
          _
        // Predicated region
        $region57: #{text_model_forward.1} parent=39 // pred_check
          %p549 = pneg %p233
        $region58: #{text_model_forward.1} parent=39 // pred_check_branch
          %551 = sbr.rel (%p549) target = $region60
        $region59: #{text_model_forward.1} parent=39 // pred_region
          %p552 = scmp.lt.s32.totalorder %s25, 1
          %s553 = scalar_select %p552, %s25, 1
          %s554 = scalar_lea.vmem %s8, %s553
        $region60: #{text_model_forward.1} parent=39 // pred_fallthru
          _
        // Predicated region
        $region61: #{text_model_forward.1} parent=39 // pred_check
          %p555 = pneg %p259
        $region62: #{text_model_forward.1} parent=39 // pred_check_branch
          %557 = sbr.rel (%p555) target = $region64
        $region63: #{text_model_forward.1} parent=39 // pred_region
          %p558 = scmp.lt.s32.totalorder %s25, 1
          %s559 = scalar_select %p558, %s25, 1
          %s560 = scalar_lea.vmem %s9, %s559
        $region64: #{text_model_forward.1} parent=39 // pred_fallthru
          _
        // Predicated region
        $region65: #{text_model_forward.1} parent=39 // pred_check
          %p561 = pneg %p285
        $region66: #{text_model_forward.1} parent=39 // pred_check_branch
          %563 = sbr.rel (%p561) target = $region68
        $region67: #{text_model_forward.1} parent=39 // pred_region
          %p564 = scmp.lt.s32.totalorder %s25, 1
          %s565 = scalar_select %p564, %s25, 1
          %s566 = smul.addr %s565, 4
          %s567 = smul.addr %s566, 4
          %s568 = scalar_lea.vmem %s10, %s567
        $region68: #{text_model_forward.1} parent=39 // pred_fallthru
          _
        // Predicated region
        $region69: #{text_model_forward.1} parent=39 // pred_check
          %p569 = pneg %p311
        $region70: #{text_model_forward.1} parent=39 // pred_check_branch
          %571 = sbr.rel (%p569) target = $region72
        $region71: #{text_model_forward.1} parent=39 // pred_region
          %p572 = scmp.lt.s32.totalorder %s25, 1
          %s573 = scalar_select %p572, %s25, 1
          %s574 = scalar_lea.vmem %s11, %s573
        $region72: #{text_model_forward.1} parent=39 // pred_fallthru
          _
        // Predicated region
        $region73: #{text_model_forward.1} parent=39 // pred_check
          %p575 = pneg %p337
        $region74: #{text_model_forward.1} parent=39 // pred_check_branch
          %577 = sbr.rel (%p575) target = $region76
        $region75: #{text_model_forward.1} parent=39 // pred_region
          %p578 = scmp.lt.s32.totalorder %s25, 1
          %s579 = scalar_select %p578, %s25, 1
          %s580 = smul.addr %s579, 8
          %s581 = smul.addr %s580, 4
          %s582 = scalar_lea.vmem %s12, %s581
        $region76: #{text_model_forward.1} parent=39 // pred_fallthru
          _
        // Predicated region
        $region77: #{text_model_forward.1} parent=39 // pred_check
          %p583 = pneg %p363
        $region78: #{text_model_forward.1} parent=39 // pred_check_branch
          %585 = sbr.rel (%p583) target = $region80
        $region79: #{text_model_forward.1} parent=39 // pred_region
          %p586 = scmp.lt.s32.totalorder %s25, 1
          %s587 = scalar_select %p586, %s25, 1
          %s588 = scalar_lea.vmem %s13, %s587
        $region80: #{text_model_forward.1} parent=39 // pred_fallthru
          _
        // Predicated region
        $region81: #{text_model_forward.1} parent=39 // pred_check
          %p589 = pneg %p389
        $region82: #{text_model_forward.1} parent=39 // pred_check_branch
          %591 = sbr.rel (%p589) target = $region84
        $region83: #{text_model_forward.1} parent=39 // pred_region
          %p592 = scmp.lt.s32.totalorder %s25, 1
          %s593 = scalar_select %p592, %s25, 1
          %s594 = scalar_lea.vmem %s14, %s593
        $region84: #{text_model_forward.1} parent=39 // pred_fallthru
          _
        // Predicated region
        $region85: #{text_model_forward.1} parent=39 // pred_check
          %p595 = pneg %p415
        $region86: #{text_model_forward.1} parent=39 // pred_check_branch
          %597 = sbr.rel (%p595) target = $region88
        $region87: #{text_model_forward.1} parent=39 // pred_region
          %p598 = scmp.lt.s32.totalorder %s25, 1
          %s599 = scalar_select %p598, %s25, 1
          %s600 = scalar_lea.vmem %s15, %s599
        $region88: #{text_model_forward.1} parent=39 // pred_fallthru
          _
      $region40: #{text_model_forward.1} parent=5 // pred_fallthru
        _
      %p601 = scmp.le.s32.totalorder 1, %s25
      %p602 = scmp.lt.s32.totalorder %s25, 3
      %p603 = pnand %p601, %p602
      %p604 = pneg %p603
      // Predicated region
      $region89: #{text_model_forward.1} parent=5 // pred_check
        _
      $region90: #{text_model_forward.1} parent=5 // pred_check_branch
        %606 = sbr.rel (%p603) target = $region92
      $region91: #{text_model_forward.1} parent=5 // pred_region
        %s607 = ssub.s32 %s25, 1
        %p608 = pneg %p46
        %p609 = pneg %p43
        %p610 = pneg %p67
        %p611 = pneg %p64
        %p612 = pneg %p88
        %p613 = pneg %p85
        %p614 = pneg %p109
        %p615 = pneg %p106
        %p616 = scmp.lt.s32.totalorder %s30, 1
        %s617 = scalar_select %p616, %s30, 1
        %s618 = smul.addr %s617, 4
        %s619 = smul.addr %s618, 4
        %s620 = scalar_lea.vmem %s4, %s619
        %p621 = pneg %p135
        %p622 = pneg %p132
        %p623 = scmp.lt.s32.totalorder %s30, 1
        %s624 = scalar_select %p623, %s30, 1
        %s625 = scalar_lea.vmem %s5, %s624
        %p626 = pneg %p161
        %p627 = pneg %p158
        %p628 = scmp.lt.s32.totalorder %s30, 1
        %s629 = scalar_select %p628, %s30, 1
        %s630 = smul.addr %s629, 4
        %s631 = smul.addr %s630, 4
        %s632 = scalar_lea.vmem %s6, %s631
        %p633 = pneg %p187
        %p634 = pneg %p184
        %p635 = scmp.lt.s32.totalorder %s30, 1
        %s636 = scalar_select %p635, %s30, 1
        %s637 = scalar_lea.vmem %s7, %s636
        %p638 = pneg %p213
        %p639 = pneg %p210
        %p640 = scmp.lt.s32.totalorder %s30, 1
        %s641 = scalar_select %p640, %s30, 1
        %s642 = scalar_lea.vmem %s8, %s641
        %p643 = pneg %p239
        %p644 = pneg %p236
        %p645 = scmp.lt.s32.totalorder %s30, 1
        %s646 = scalar_select %p645, %s30, 1
        %s647 = scalar_lea.vmem %s9, %s646
        %p648 = pneg %p265
        %p649 = pneg %p262
        %p650 = scmp.lt.s32.totalorder %s30, 1
        %s651 = scalar_select %p650, %s30, 1
        %s652 = smul.addr %s651, 4
        %s653 = smul.addr %s652, 4
        %s654 = scalar_lea.vmem %s10, %s653
        %p655 = pneg %p291
        %p656 = pneg %p288
        %p657 = scmp.lt.s32.totalorder %s30, 1
        %s658 = scalar_select %p657, %s30, 1
        %s659 = scalar_lea.vmem %s11, %s658
        %p660 = pneg %p317
        %p661 = pneg %p314
        %p662 = scmp.lt.s32.totalorder %s30, 1
        %s663 = scalar_select %p662, %s30, 1
        %s664 = smul.addr %s663, 8
        %s665 = smul.addr %s664, 4
        %s666 = scalar_lea.vmem %s12, %s665
        %p667 = pneg %p343
        %p668 = pneg %p340
        %p669 = scmp.lt.s32.totalorder %s30, 1
        %s670 = scalar_select %p669, %s30, 1
        %s671 = scalar_lea.vmem %s13, %s670
        %p672 = pneg %p369
        %p673 = pneg %p366
        %p674 = scmp.lt.s32.totalorder %s30, 1
        %s675 = scalar_select %p674, %s30, 1
        %s676 = scalar_lea.vmem %s14, %s675
        %p677 = pneg %p395
        %p678 = pneg %p392
        %p679 = scmp.lt.s32.totalorder %s30, 1
        %s680 = scalar_select %p679, %s30, 1
        %s681 = scalar_lea.vmem %s15, %s680
        %p682 = pneg %p421
        %p683 = pneg %p418
        %p684 = pneg %p442
        %p685 = pneg %p439
        %p686 = pneg %p463
        %p687 = pneg %p460
        %p688 = pneg %p484
        %p689 = pneg %p481
        %p690 = scmp.lt.s32.totalorder %s30, 1
        %s691 = scalar_select %p690, %s30, 1
        %s692 = smul.addr %s691, 4
        %s693 = smul.addr %s692, 4
        %s694 = scalar_lea.vmem %s4, %s693
        %p695 = scmp.lt.s32.totalorder %s30, 1
        %s696 = scalar_select %p695, %s30, 1
        %s697 = scalar_lea.vmem %s5, %s696
        %p698 = scmp.lt.s32.totalorder %s30, 1
        %s699 = scalar_select %p698, %s30, 1
        %s700 = smul.addr %s699, 4
        %s701 = smul.addr %s700, 4
        %s702 = scalar_lea.vmem %s6, %s701
        %p703 = scmp.lt.s32.totalorder %s30, 1
        %s704 = scalar_select %p703, %s30, 1
        %s705 = scalar_lea.vmem %s7, %s704
        %p706 = scmp.lt.s32.totalorder %s30, 1
        %s707 = scalar_select %p706, %s30, 1
        %s708 = scalar_lea.vmem %s8, %s707
        %p709 = scmp.lt.s32.totalorder %s30, 1
        %s710 = scalar_select %p709, %s30, 1
        %s711 = scalar_lea.vmem %s9, %s710
        %p712 = scmp.lt.s32.totalorder %s30, 1
        %s713 = scalar_select %p712, %s30, 1
        %s714 = smul.addr %s713, 4
        %s715 = smul.addr %s714, 4
        %s716 = scalar_lea.vmem %s10, %s715
        %p717 = scmp.lt.s32.totalorder %s30, 1
        %s718 = scalar_select %p717, %s30, 1
        %s719 = scalar_lea.vmem %s11, %s718
        %p720 = scmp.lt.s32.totalorder %s30, 1
        %s721 = scalar_select %p720, %s30, 1
        %s722 = smul.addr %s721, 8
        %s723 = smul.addr %s722, 4
        %s724 = scalar_lea.vmem %s12, %s723
        %p725 = scmp.lt.s32.totalorder %s30, 1
        %s726 = scalar_select %p725, %s30, 1
        %s727 = scalar_lea.vmem %s13, %s726
        %p728 = scmp.lt.s32.totalorder %s30, 1
        %s729 = scalar_select %p728, %s30, 1
        %s730 = scalar_lea.vmem %s14, %s729
        %p731 = scmp.lt.s32.totalorder %s30, 1
        %s732 = scalar_select %p731, %s30, 1
        %s733 = scalar_lea.vmem %s15, %s732
        %p735 = scmp.eq.s32.totalorder %s30, 0
        // Predicated region
        $region93: #{text_model_forward.1} parent=91 // pred_check
          %p736 = pneg %p735
        $region94: #{text_model_forward.1} parent=91 // pred_check_branch
          %738 = sbr.rel (%p736) target = $region96
        $region95: #{text_model_forward.1} parent=91 // pred_region
          %v739 = vld [vmem:[%s0] sm:$0xff]
          %v740 = vld [vmem:[%s0 + $0x8] sm:$0xff]
          %v741 = vld [vmem:[%s2] sm:$0x1]
          %v742 = vld [vmem:[%s3] sm:$0x1]
          %vm743 = vcmask 261120
          %v744 = vsel %vm743, %v739, 0.0
          %745 = vadd.xlane.f32.xlu0 %v744
          %v746 = vpop.xlane.xlu0 %745
          %v747 = vsel %vm743, %v740, 0.0
          %748 = vadd.xlane.f32.xlu0 %v747
          %v749 = vpop.xlane.xlu0 %748
          %v750 = vrcp.pop 32.0
          %v751 = vmul.f32 32.0, %v750
          %v752 = vsub.f32 1.0, %v751
          %v753 = vmul.f32 %v750, %v752
          %v754 = vadd.f32 %v750, %v753
          %vm755 = vweird.f32 %v750
          %v756 = vsel %vm755, %v750, %v754
          %v757 = vmul.f32 %v746, %v756
          %v758 = vmul.f32 %v749, %v756
          %v759 = vsub.f32 %v739, %v757
          %v760 = vsub.f32 %v740, %v758
          %v761 = vmul.f32 %v759, %v759
          %v762 = vmul.f32 %v760, %v760
          %v763 = vsel %vm743, %v761, 0.0
          %764 = vadd.xlane.f32.xlu0 %v763
          %v765 = vpop.xlane.xlu0 %764
          %v766 = vsel %vm743, %v762, 0.0
          %767 = vadd.xlane.f32.xlu0 %v766
          %v768 = vpop.xlane.xlu0 %767
          %v769 = vmul.f32 %v765, %v756
          %v770 = vmul.f32 %v768, %v756
          %v771 = vadd.f32 %v769, 1e-12
          %v772 = vadd.f32 %v770, 1e-12
          %v773 = vrsqrt.pop %v771
          %v774 = vmul.f32 %v773, %v771
          %v775 = vmul.f32 %v774, %v773
          %v776 = vmul.f32 0.5, %v775
          %v777 = vsub.f32 1.5, %v776
          %v778 = vmul.f32 %v773, %v777
          %vm779 = vweird.f32 %v771
          %vm780 = vweird.f32 %v773
          %vm781 = vmor %vm779, %vm780
          %v782 = vsel %vm781, %v773, %v778
          %v783 = vrsqrt.pop %v772
          %v784 = vmul.f32 %v783, %v772
          %v785 = vmul.f32 %v784, %v783
          %v786 = vmul.f32 0.5, %v785
          %v787 = vsub.f32 1.5, %v786
          %v788 = vmul.f32 %v783, %v787
          %vm789 = vweird.f32 %v772
          %vm790 = vweird.f32 %v783
          %vm791 = vmor %vm789, %vm790
          %v792 = vsel %vm791, %v783, %v788
          %v793 = vmul.f32 %v759, %v782
          %v794 = vmul.f32 %v760, %v792
          %v796 = vperm.slane %v741, 0
          %v798 = vmul.f32 %v793, %v796
          %v799 = vmul.f32 %v794, %v796
          %v801 = vperm.slane %v742, 0
          %v803 = vadd.f32 %v798, %v801
          %v804 = vadd.f32 %v799, %v801
          %805 = vst.msk [vmem:[#allocation2] sm:$0xff] %vm743, %v803
          %806 = vst.msk [vmem:[#allocation2 + $0x8] sm:$0xff] %vm743, %v804
        $region96: #{text_model_forward.1} parent=91 // pred_fallthru
          _
        %v807 = vld [vmem:[#allocation2] sm:$0xff]
        %v808 = vld [vmem:[#allocation2 + $0x8] sm:$0xff]
        %v809 = vpack.c.bf16 %v808, %v807
        %v810 = vld [vmem:[%s694] sm:$0xf]
        %v811 = vld [vmem:[%s694 + $0x4] sm:$0xf]
        %v812 = vld [vmem:[%s694 + $0x8] sm:$0xf]
        %v813 = vld [vmem:[%s694 + $0xc] sm:$0xf]
        %v814 = vld [vmem:[%s697] sm:$0x1]
        %v816 = vperm.slane %v814, 0
        %v822 = vunpack.c.l.b16 %v810
        %v823 = vunpack.c.l.b16 %v811
        %v824 = vunpack.c.l.b16 %v812
        %v825 = vunpack.c.l.b16 %v813
        %v826 = vpack.c.b16 %v823, %v822
        %v827 = vpack.c.b16 %v825, %v824
        %vm830 = vcmask 261120
        %v832 = vsel %vm830, %v809, 0
        %834 = vmatpush.bf16.msra.mxu0 0
        %835 = vmatpush.bf16.msra.mxu0 0
        %836 = vmatpush.bf16.msra.mxu0 0
        %837 = vmatpush.bf16.msra.mxu0 0
        %838 = vmatpush.bf16.msra.mxu0 0
        %839 = vmatpush.bf16.msra.mxu0 0
        %840 = vmatpush.bf16.msra.mxu0 %v827
        %841 = vmatpush.bf16.msra.mxu0 %v826
        %842 = vmatmul.bf16.gmra.mxu0 %v832
        %v843 = vpop.f32.mrf.mxu0
        %v844 = vadd.f32 %v816, %v843
        %v845 = vpop.f32.mrf.mxu0
        %v846 = vadd.f32 %v816, %v845
        %847 = vdwg.mxu0
        %v848 = vld [vmem:[%s1] sm:$0xff]
        %v849 = vld [vmem:[%s1 + $0x8] sm:$0xff]
        %v850 = vpack.c.bf16 %v844, %v844
        %v851 = vpack.c.bf16 %v846, %v846
        %v853 = vunpack.c.l.b16 %v850
        %v854 = vpack.c.b16 %v853, %v853
        %855 = vrot.lane.b32.xlu0 %v854, 96
        %v856 = vpop.permute.xlu0 %855
        %vm857 = vcmask 64512
        %v859 = vsel %vm857, %v850, 0
        %v862 = vsel %vm857, %v856, 0
        %864 = vmatpush.bf16.xpose.msra.mxu0 0
        %865 = vmatpush.bf16.xpose.msra.mxu0 0
        %866 = vmatpush.bf16.xpose.msra.mxu0 0
        %867 = vmatpush.bf16.xpose.msra.mxu0 0
        %868 = vmatpush.bf16.xpose.msra.mxu0 0
        %869 = vmatpush.bf16.xpose.msra.mxu0 0
        %870 = vmatpush.bf16.xpose.msra.mxu0 0
        %871 = vmatpush.bf16.xpose.msra.mxu0 %v862
        %872 = vmatmul.bf16.gmra.mxu0 %v859
        %v873 = vpop.f32.mrf.mxu0
        %v874 = vadd.f32 %v848, %v873
        %v875 = vpop.f32.mrf.mxu0
        %876 = vdwg.mxu0
        %v878 = vunpack.c.l.b16 %v851
        %v879 = vpack.c.b16 %v878, %v878
        %880 = vrot.lane.b32.xlu0 %v879, 96
        %v881 = vpop.permute.xlu0 %880
        %v883 = vsel %vm857, %v851, 0
        %v886 = vsel %vm857, %v881, 0
        %888 = vmatpush.bf16.xpose.msra.mxu0 0
        %889 = vmatpush.bf16.xpose.msra.mxu0 0
        %890 = vmatpush.bf16.xpose.msra.mxu0 0
        %891 = vmatpush.bf16.xpose.msra.mxu0 0
        %892 = vmatpush.bf16.xpose.msra.mxu0 0
        %893 = vmatpush.bf16.xpose.msra.mxu0 0
        %894 = vmatpush.bf16.xpose.msra.mxu0 0
        %895 = vmatpush.bf16.xpose.msra.mxu0 %v886
        %896 = vmatmul.bf16.gmra.mxu0 %v883
        %v897 = vpop.f32.mrf.mxu0
        %v898 = vadd.f32 %v849, %v897
        %v899 = vpop.f32.mrf.mxu0
        %900 = vdwg.mxu0
        %v901 = vsel %vm857, %v874, -inf
        %902 = vmax.xlane.f32.xlu0 %v901
        %v903 = vpop.xlane.xlu0 %902
        %v904 = vsel %vm857, %v898, -inf
        %905 = vmax.xlane.f32.xlu0 %v904
        %v906 = vpop.xlane.xlu0 %905
        %v907 = vsub.f32 %v874, %v903
        %v908 = vsub.f32 %v898, %v906
        %v909 = vmul.f32 %v907, 1.442695
        %v910 = vpow.pop %v909
        %v911 = vmul.f32 %v908, 1.442695
        %v912 = vpow.pop %v911
        %v913 = vsel %vm857, %v910, 0.0
        %914 = vadd.xlane.f32.xlu0 %v913
        %v915 = vpop.xlane.xlu0 %914
        %v916 = vsel %vm857, %v912, 0.0
        %917 = vadd.xlane.f32.xlu0 %v916
        %v918 = vpop.xlane.xlu0 %917
        %v919 = vrcp.pop %v915
        %v920 = vrcp.pop %v918
        %v921 = vmul.f32 %v910, %v919
        %v922 = vmul.f32 %v912, %v920
        %v923 = vpack.c.bf16 %v921, %v921
        %v924 = vpack.c.bf16 %v922, %v922
        %925 = vrot.lane.b32.xlu0 %v854, 64
        %v926 = vpop.permute.xlu0 %925
        %v928 = vsel %vm857, %v923, 0
        %vm930 = vcmask 1043456
        %v932 = vsel %vm930, %v926, 0
        %934 = vmatpush.bf16.msra.mxu0 0
        %935 = vmatpush.bf16.msra.mxu0 0
        %936 = vmatpush.bf16.msra.mxu0 0
        %937 = vmatpush.bf16.msra.mxu0 0
        %938 = vmatpush.bf16.msra.mxu0 0
        %939 = vmatpush.bf16.msra.mxu0 0
        %940 = vmatpush.bf16.msra.mxu0 0
        %941 = vmatpush.bf16.msra.mxu0 %v932
        %942 = vmatmul.bf16.gmra.mxu0 %v928
        %v943 = vpop.f32.mrf.mxu0
        %v944 = vadd.f32 0.0, %v943
        %v945 = vpop.f32.mrf.mxu0
        %946 = vdwg.mxu0
        %947 = vrot.lane.b32.xlu0 %v879, 64
        %v948 = vpop.permute.xlu0 %947
        %v950 = vsel %vm857, %v924, 0
        %v953 = vsel %vm930, %v948, 0
        %955 = vmatpush.bf16.msra.mxu0 0
        %956 = vmatpush.bf16.msra.mxu0 0
        %957 = vmatpush.bf16.msra.mxu0 0
        %958 = vmatpush.bf16.msra.mxu0 0
        %959 = vmatpush.bf16.msra.mxu0 0
        %960 = vmatpush.bf16.msra.mxu0 0
        %961 = vmatpush.bf16.msra.mxu0 0
        %962 = vmatpush.bf16.msra.mxu0 %v953
        %963 = vmatmul.bf16.gmra.mxu0 %v950
        %v964 = vpop.f32.mrf.mxu0
        %v965 = vadd.f32 0.0, %v964
        %v966 = vpop.f32.mrf.mxu0
        %967 = vdwg.mxu0
        %968 = vrot.lane.b32.xlu0 %v854, 120
        %v969 = vpop.permute.xlu0 %968
        %970 = vrot.lane.b32.xlu0 %v854, 88
        %v971 = vpop.permute.xlu0 %970
        %v973 = vsel %vm857, %v969, 0
        %v976 = vsel %vm857, %v971, 0
        %978 = vmatpush.bf16.xpose.msra.mxu0 0
        %979 = vmatpush.bf16.xpose.msra.mxu0 0
        %980 = vmatpush.bf16.xpose.msra.mxu0 0
        %981 = vmatpush.bf16.xpose.msra.mxu0 0
        %982 = vmatpush.bf16.xpose.msra.mxu0 0
        %983 = vmatpush.bf16.xpose.msra.mxu0 0
        %984 = vmatpush.bf16.xpose.msra.mxu0 0
        %985 = vmatpush.bf16.xpose.msra.mxu0 %v976
        %986 = vmatmul.bf16.gmra.mxu0 %v973
        %v987 = vpop.f32.mrf.mxu0
        %v988 = vadd.f32 %v848, %v987
        %v989 = vpop.f32.mrf.mxu0
        %990 = vdwg.mxu0
        %991 = vrot.lane.b32.xlu0 %v879, 120
        %v992 = vpop.permute.xlu0 %991
        %993 = vrot.lane.b32.xlu0 %v879, 88
        %v994 = vpop.permute.xlu0 %993
        %v996 = vsel %vm857, %v992, 0
        %v999 = vsel %vm857, %v994, 0
        %1001 = vmatpush.bf16.xpose.msra.mxu0 0
        %1002 = vmatpush.bf16.xpose.msra.mxu0 0
        %1003 = vmatpush.bf16.xpose.msra.mxu0 0
        %1004 = vmatpush.bf16.xpose.msra.mxu0 0
        %1005 = vmatpush.bf16.xpose.msra.mxu0 0
        %1006 = vmatpush.bf16.xpose.msra.mxu0 0
        %1007 = vmatpush.bf16.xpose.msra.mxu0 0
        %1008 = vmatpush.bf16.xpose.msra.mxu0 %v999
        %1009 = vmatmul.bf16.gmra.mxu0 %v996
        %v1010 = vpop.f32.mrf.mxu0
        %v1011 = vadd.f32 %v849, %v1010
        %v1012 = vpop.f32.mrf.mxu0
        %1013 = vdwg.mxu0
        %v1014 = vsel %vm857, %v988, -inf
        %1015 = vmax.xlane.f32.xlu0 %v1014
        %v1016 = vpop.xlane.xlu0 %1015
        %v1017 = vsel %vm857, %v1011, -inf
        %1018 = vmax.xlane.f32.xlu0 %v1017
        %v1019 = vpop.xlane.xlu0 %1018
        %v1020 = vsub.f32 %v988, %v1016
        %v1021 = vsub.f32 %v1011, %v1019
        %v1022 = vmul.f32 %v1020, 1.442695
        %v1023 = vpow.pop %v1022
        %v1024 = vmul.f32 %v1021, 1.442695
        %v1025 = vpow.pop %v1024
        %v1026 = vsel %vm857, %v1023, 0.0
        %1027 = vadd.xlane.f32.xlu0 %v1026
        %v1028 = vpop.xlane.xlu0 %1027
        %v1029 = vsel %vm857, %v1025, 0.0
        %1030 = vadd.xlane.f32.xlu0 %v1029
        %v1031 = vpop.xlane.xlu0 %1030
        %v1032 = vrcp.pop %v1028
        %v1033 = vrcp.pop %v1031
        %v1034 = vmul.f32 %v1023, %v1032
        %v1035 = vmul.f32 %v1025, %v1033
        %v1036 = vpack.c.bf16 %v1034, %v1034
        %v1037 = vpack.c.bf16 %v1035, %v1035
        %1038 = vrot.lane.b32.xlu0 %v854, 56
        %v1039 = vpop.permute.xlu0 %1038
        %v1041 = vsel %vm857, %v1036, 0
        %v1044 = vsel %vm930, %v1039, 0
        %1046 = vmatpush.bf16.msra.mxu0 0
        %1047 = vmatpush.bf16.msra.mxu0 0
        %1048 = vmatpush.bf16.msra.mxu0 0
        %1049 = vmatpush.bf16.msra.mxu0 0
        %1050 = vmatpush.bf16.msra.mxu0 0
        %1051 = vmatpush.bf16.msra.mxu0 0
        %1052 = vmatpush.bf16.msra.mxu0 0
        %1053 = vmatpush.bf16.msra.mxu0 %v1044
        %1054 = vmatmul.bf16.gmra.mxu0 %v1041
        %v1055 = vpop.f32.mrf.mxu0
        %v1056 = vadd.f32 0.0, %v1055
        %v1057 = vpop.f32.mrf.mxu0
        %1058 = vdwg.mxu0
        %1059 = vrot.lane.b32.xlu0 %v879, 56
        %v1060 = vpop.permute.xlu0 %1059
        %v1062 = vsel %vm857, %v1037, 0
        %v1065 = vsel %vm930, %v1060, 0
        %1067 = vmatpush.bf16.msra.mxu0 0
        %1068 = vmatpush.bf16.msra.mxu0 0
        %1069 = vmatpush.bf16.msra.mxu0 0
        %1070 = vmatpush.bf16.msra.mxu0 0
        %1071 = vmatpush.bf16.msra.mxu0 0
        %1072 = vmatpush.bf16.msra.mxu0 0
        %1073 = vmatpush.bf16.msra.mxu0 0
        %1074 = vmatpush.bf16.msra.mxu0 %v1065
        %1075 = vmatmul.bf16.gmra.mxu0 %v1062
        %v1076 = vpop.f32.mrf.mxu0
        %v1077 = vadd.f32 0.0, %v1076
        %v1078 = vpop.f32.mrf.mxu0
        %1079 = vdwg.mxu0
        %1080 = vrot.lane.b32.xlu0 %v854, 112
        %v1081 = vpop.permute.xlu0 %1080
        %1082 = vrot.lane.b32.xlu0 %v854, 80
        %v1083 = vpop.permute.xlu0 %1082
        %v1085 = vsel %vm857, %v1081, 0
        %v1088 = vsel %vm857, %v1083, 0
        %1090 = vmatpush.bf16.xpose.msra.mxu0 0
        %1091 = vmatpush.bf16.xpose.msra.mxu0 0
        %1092 = vmatpush.bf16.xpose.msra.mxu0 0
        %1093 = vmatpush.bf16.xpose.msra.mxu0 0
        %1094 = vmatpush.bf16.xpose.msra.mxu0 0
        %1095 = vmatpush.bf16.xpose.msra.mxu0 0
        %1096 = vmatpush.bf16.xpose.msra.mxu0 0
        %1097 = vmatpush.bf16.xpose.msra.mxu0 %v1088
        %1098 = vmatmul.bf16.gmra.mxu0 %v1085
        %v1099 = vpop.f32.mrf.mxu0
        %v1100 = vadd.f32 %v848, %v1099
        %v1101 = vpop.f32.mrf.mxu0
        %1102 = vdwg.mxu0
        %1103 = vrot.lane.b32.xlu0 %v879, 112
        %v1104 = vpop.permute.xlu0 %1103
        %1105 = vrot.lane.b32.xlu0 %v879, 80
        %v1106 = vpop.permute.xlu0 %1105
        %v1108 = vsel %vm857, %v1104, 0
        %v1111 = vsel %vm857, %v1106, 0
        %1113 = vmatpush.bf16.xpose.msra.mxu0 0
        %1114 = vmatpush.bf16.xpose.msra.mxu0 0
        %1115 = vmatpush.bf16.xpose.msra.mxu0 0
        %1116 = vmatpush.bf16.xpose.msra.mxu0 0
        %1117 = vmatpush.bf16.xpose.msra.mxu0 0
        %1118 = vmatpush.bf16.xpose.msra.mxu0 0
        %1119 = vmatpush.bf16.xpose.msra.mxu0 0
        %1120 = vmatpush.bf16.xpose.msra.mxu0 %v1111
        %1121 = vmatmul.bf16.gmra.mxu0 %v1108
        %v1122 = vpop.f32.mrf.mxu0
        %v1123 = vadd.f32 %v849, %v1122
        %v1124 = vpop.f32.mrf.mxu0
        %1125 = vdwg.mxu0
        %v1126 = vsel %vm857, %v1100, -inf
        %1127 = vmax.xlane.f32.xlu0 %v1126
        %v1128 = vpop.xlane.xlu0 %1127
        %v1129 = vsel %vm857, %v1123, -inf
        %1130 = vmax.xlane.f32.xlu0 %v1129
        %v1131 = vpop.xlane.xlu0 %1130
        %v1132 = vsub.f32 %v1100, %v1128
        %v1133 = vsub.f32 %v1123, %v1131
        %v1134 = vmul.f32 %v1132, 1.442695
        %v1135 = vpow.pop %v1134
        %v1136 = vmul.f32 %v1133, 1.442695
        %v1137 = vpow.pop %v1136
        %v1138 = vsel %vm857, %v1135, 0.0
        %1139 = vadd.xlane.f32.xlu0 %v1138
        %v1140 = vpop.xlane.xlu0 %1139
        %v1141 = vsel %vm857, %v1137, 0.0
        %1142 = vadd.xlane.f32.xlu0 %v1141
        %v1143 = vpop.xlane.xlu0 %1142
        %v1144 = vrcp.pop %v1140
        %v1145 = vrcp.pop %v1143
        %v1146 = vmul.f32 %v1135, %v1144
        %v1147 = vmul.f32 %v1137, %v1145
        %v1148 = vpack.c.bf16 %v1146, %v1146
        %v1149 = vpack.c.bf16 %v1147, %v1147
        %1150 = vrot.lane.b32.xlu0 %v854, 48
        %v1151 = vpop.permute.xlu0 %1150
        %v1153 = vsel %vm857, %v1148, 0
        %v1156 = vsel %vm930, %v1151, 0
        %1158 = vmatpush.bf16.msra.mxu0 0
        %1159 = vmatpush.bf16.msra.mxu0 0
        %1160 = vmatpush.bf16.msra.mxu0 0
        %1161 = vmatpush.bf16.msra.mxu0 0
        %1162 = vmatpush.bf16.msra.mxu0 0
        %1163 = vmatpush.bf16.msra.mxu0 0
        %1164 = vmatpush.bf16.msra.mxu0 0
        %1165 = vmatpush.bf16.msra.mxu0 %v1156
        %1166 = vmatmul.bf16.gmra.mxu0 %v1153
        %v1167 = vpop.f32.mrf.mxu0
        %v1168 = vadd.f32 0.0, %v1167
        %v1169 = vpop.f32.mrf.mxu0
        %1170 = vdwg.mxu0
        %1171 = vrot.lane.b32.xlu0 %v879, 48
        %v1172 = vpop.permute.xlu0 %1171
        %v1174 = vsel %vm857, %v1149, 0
        %v1177 = vsel %vm930, %v1172, 0
        %1179 = vmatpush.bf16.msra.mxu0 0
        %1180 = vmatpush.bf16.msra.mxu0 0
        %1181 = vmatpush.bf16.msra.mxu0 0
        %1182 = vmatpush.bf16.msra.mxu0 0
        %1183 = vmatpush.bf16.msra.mxu0 0
        %1184 = vmatpush.bf16.msra.mxu0 0
        %1185 = vmatpush.bf16.msra.mxu0 0
        %1186 = vmatpush.bf16.msra.mxu0 %v1177
        %1187 = vmatmul.bf16.gmra.mxu0 %v1174
        %v1188 = vpop.f32.mrf.mxu0
        %v1189 = vadd.f32 0.0, %v1188
        %v1190 = vpop.f32.mrf.mxu0
        %1191 = vdwg.mxu0
        %1192 = vrot.lane.b32.xlu0 %v854, 104
        %v1193 = vpop.permute.xlu0 %1192
        %1194 = vrot.lane.b32.xlu0 %v854, 72
        %v1195 = vpop.permute.xlu0 %1194
        %v1197 = vsel %vm857, %v1193, 0
        %v1200 = vsel %vm857, %v1195, 0
        %1202 = vmatpush.bf16.xpose.msra.mxu0 0
        %1203 = vmatpush.bf16.xpose.msra.mxu0 0
        %1204 = vmatpush.bf16.xpose.msra.mxu0 0
        %1205 = vmatpush.bf16.xpose.msra.mxu0 0
        %1206 = vmatpush.bf16.xpose.msra.mxu0 0
        %1207 = vmatpush.bf16.xpose.msra.mxu0 0
        %1208 = vmatpush.bf16.xpose.msra.mxu0 0
        %1209 = vmatpush.bf16.xpose.msra.mxu0 %v1200
        %1210 = vmatmul.bf16.gmra.mxu0 %v1197
        %v1211 = vpop.f32.mrf.mxu0
        %v1212 = vadd.f32 %v848, %v1211
        %v1213 = vpop.f32.mrf.mxu0
        %1214 = vdwg.mxu0
        %1215 = vrot.lane.b32.xlu0 %v879, 104
        %v1216 = vpop.permute.xlu0 %1215
        %1217 = vrot.lane.b32.xlu0 %v879, 72
        %v1218 = vpop.permute.xlu0 %1217
        %v1220 = vsel %vm857, %v1216, 0
        %v1223 = vsel %vm857, %v1218, 0
        %1225 = vmatpush.bf16.xpose.msra.mxu0 0
        %1226 = vmatpush.bf16.xpose.msra.mxu0 0
        %1227 = vmatpush.bf16.xpose.msra.mxu0 0
        %1228 = vmatpush.bf16.xpose.msra.mxu0 0
        %1229 = vmatpush.bf16.xpose.msra.mxu0 0
        %1230 = vmatpush.bf16.xpose.msra.mxu0 0
        %1231 = vmatpush.bf16.xpose.msra.mxu0 0
        %1232 = vmatpush.bf16.xpose.msra.mxu0 %v1223
        %1233 = vmatmul.bf16.gmra.mxu0 %v1220
        %v1234 = vpop.f32.mrf.mxu0
        %v1235 = vadd.f32 %v849, %v1234
        %v1236 = vpop.f32.mrf.mxu0
        %1237 = vdwg.mxu0
        %v1238 = vsel %vm857, %v1212, -inf
        %1239 = vmax.xlane.f32.xlu0 %v1238
        %v1240 = vpop.xlane.xlu0 %1239
        %v1241 = vsel %vm857, %v1235, -inf
        %1242 = vmax.xlane.f32.xlu0 %v1241
        %v1243 = vpop.xlane.xlu0 %1242
        %v1244 = vsub.f32 %v1212, %v1240
        %v1245 = vsub.f32 %v1235, %v1243
        %v1246 = vmul.f32 %v1244, 1.442695
        %v1247 = vpow.pop %v1246
        %v1248 = vmul.f32 %v1245, 1.442695
        %v1249 = vpow.pop %v1248
        %v1250 = vsel %vm857, %v1247, 0.0
        %1251 = vadd.xlane.f32.xlu0 %v1250
        %v1252 = vpop.xlane.xlu0 %1251
        %v1253 = vsel %vm857, %v1249, 0.0
        %1254 = vadd.xlane.f32.xlu0 %v1253
        %v1255 = vpop.xlane.xlu0 %1254
        %v1256 = vrcp.pop %v1252
        %v1257 = vrcp.pop %v1255
        %v1258 = vmul.f32 %v1247, %v1256
        %v1259 = vmul.f32 %v1249, %v1257
        %v1260 = vpack.c.bf16 %v1258, %v1258
        %v1261 = vpack.c.bf16 %v1259, %v1259
        %1262 = vrot.lane.b32.xlu0 %v854, 40
        %v1263 = vpop.permute.xlu0 %1262
        %v1265 = vsel %vm857, %v1260, 0
        %v1268 = vsel %vm930, %v1263, 0
        %1270 = vmatpush.bf16.msra.mxu0 0
        %1271 = vmatpush.bf16.msra.mxu0 0
        %1272 = vmatpush.bf16.msra.mxu0 0
        %1273 = vmatpush.bf16.msra.mxu0 0
        %1274 = vmatpush.bf16.msra.mxu0 0
        %1275 = vmatpush.bf16.msra.mxu0 0
        %1276 = vmatpush.bf16.msra.mxu0 0
        %1277 = vmatpush.bf16.msra.mxu0 %v1268
        %1278 = vmatmul.bf16.gmra.mxu0 %v1265
        %v1279 = vpop.f32.mrf.mxu0
        %v1280 = vadd.f32 0.0, %v1279
        %v1281 = vpop.f32.mrf.mxu0
        %1282 = vdwg.mxu0
        %1283 = vrot.lane.b32.xlu0 %v879, 40
        %v1284 = vpop.permute.xlu0 %1283
        %v1286 = vsel %vm857, %v1261, 0
        %v1289 = vsel %vm930, %v1284, 0
        %1291 = vmatpush.bf16.msra.mxu0 0
        %1292 = vmatpush.bf16.msra.mxu0 0
        %1293 = vmatpush.bf16.msra.mxu0 0
        %1294 = vmatpush.bf16.msra.mxu0 0
        %1295 = vmatpush.bf16.msra.mxu0 0
        %1296 = vmatpush.bf16.msra.mxu0 0
        %1297 = vmatpush.bf16.msra.mxu0 0
        %1298 = vmatpush.bf16.msra.mxu0 %v1289
        %1299 = vmatmul.bf16.gmra.mxu0 %v1286
        %v1300 = vpop.f32.mrf.mxu0
        %v1301 = vadd.f32 0.0, %v1300
        %v1302 = vpop.f32.mrf.mxu0
        %1303 = vdwg.mxu0
        %1306 = vrot.lane.b32.xlu0 %v1056, 8
        %v1307 = vpop.permute.xlu0 %1306
        %1308 = vrot.lane.b32.xlu0 %v1077, 8
        %v1309 = vpop.permute.xlu0 %1308
        %1314 = vrot.lane.b32.xlu0 %v1168, 16
        %v1315 = vpop.permute.xlu0 %1314
        %1316 = vrot.lane.b32.xlu0 %v1189, 16
        %v1317 = vpop.permute.xlu0 %1316
        %1322 = vrot.lane.b32.xlu0 %v1280, 24
        %v1323 = vpop.permute.xlu0 %1322
        %1324 = vrot.lane.b32.xlu0 %v1301, 24
        %v1325 = vpop.permute.xlu0 %1324
        %v1328 = vsel %vm857, %v944, %v1307
        %v1329 = vsel %vm857, %v965, %v1309
        %vm1330 = vcmask 130048
        %v1331 = vsel %vm1330, %v1328, %v1315
        %v1332 = vsel %vm1330, %v1329, %v1317
        %vm1333 = vcmask 195584
        %v1334 = vsel %vm1333, %v1331, %v1323
        %v1335 = vsel %vm1333, %v1332, %v1325
        %v1336 = vpack.c.bf16 %v1335, %v1334
        %v1337 = vld [vmem:[%s702] sm:$0xf]
        %v1338 = vld [vmem:[%s702 + $0x4] sm:$0xf]
        %v1339 = vld [vmem:[%s702 + $0x8] sm:$0xf]
        %v1340 = vld [vmem:[%s702 + $0xc] sm:$0xf]
        %v1341 = vld [vmem:[%s705] sm:$0x1]
        %v1343 = vperm.slane %v1341, 0
        %v1349 = vunpack.c.l.b16 %v1337
        %v1350 = vunpack.c.l.b16 %v1338
        %v1351 = vunpack.c.l.b16 %v1339
        %v1352 = vunpack.c.l.b16 %v1340
        %v1353 = vpack.c.b16 %v1350, %v1349
        %v1354 = vpack.c.b16 %v1352, %v1351
        %v1358 = vsel %vm830, %v1336, 0
        %1360 = vmatpush.bf16.msra.mxu0 0
        %1361 = vmatpush.bf16.msra.mxu0 0
        %1362 = vmatpush.bf16.msra.mxu0 0
        %1363 = vmatpush.bf16.msra.mxu0 0
        %1364 = vmatpush.bf16.msra.mxu0 0
        %1365 = vmatpush.bf16.msra.mxu0 0
        %1366 = vmatpush.bf16.msra.mxu0 %v1354
        %1367 = vmatpush.bf16.msra.mxu0 %v1353
        %1368 = vmatmul.bf16.gmra.mxu0 %v1358
        %v1369 = vpop.f32.mrf.mxu0
        %v1370 = vadd.f32 %v1343, %v1369
        %v1371 = vpop.f32.mrf.mxu0
        %v1372 = vadd.f32 %v1343, %v1371
        %1373 = vdwg.mxu0
        %v1374 = vadd.f32 %v1370, %v807
        %v1375 = vadd.f32 %v1372, %v808
        %v1376 = vld [vmem:[%s708] sm:$0x1]
        %v1377 = vld [vmem:[%s711] sm:$0x1]
        %v1378 = vsel %vm830, %v1374, 0.0
        %1379 = vadd.xlane.f32.xlu0 %v1378
        %v1380 = vpop.xlane.xlu0 %1379
        %v1381 = vsel %vm830, %v1375, 0.0
        %1382 = vadd.xlane.f32.xlu0 %v1381
        %v1383 = vpop.xlane.xlu0 %1382
        %v1384 = vrcp.pop 32.0
        %v1385 = vmul.f32 32.0, %v1384
        %v1386 = vsub.f32 1.0, %v1385
        %v1387 = vmul.f32 %v1384, %v1386
        %v1388 = vadd.f32 %v1384, %v1387
        %vm1389 = vweird.f32 %v1384
        %v1390 = vsel %vm1389, %v1384, %v1388
        %v1391 = vmul.f32 %v1380, %v1390
        %v1392 = vmul.f32 %v1383, %v1390
        %v1393 = vsub.f32 %v1374, %v1391
        %v1394 = vsub.f32 %v1375, %v1392
        %v1395 = vmul.f32 %v1393, %v1393
        %v1396 = vmul.f32 %v1394, %v1394
        %v1397 = vsel %vm830, %v1395, 0.0
        %1398 = vadd.xlane.f32.xlu0 %v1397
        %v1399 = vpop.xlane.xlu0 %1398
        %v1400 = vsel %vm830, %v1396, 0.0
        %1401 = vadd.xlane.f32.xlu0 %v1400
        %v1402 = vpop.xlane.xlu0 %1401
        %v1403 = vmul.f32 %v1399, %v1390
        %v1404 = vmul.f32 %v1402, %v1390
        %v1405 = vadd.f32 %v1403, 1e-12
        %v1406 = vadd.f32 %v1404, 1e-12
        %v1407 = vrsqrt.pop %v1405
        %v1408 = vmul.f32 %v1407, %v1405
        %v1409 = vmul.f32 %v1408, %v1407
        %v1410 = vmul.f32 0.5, %v1409
        %v1411 = vsub.f32 1.5, %v1410
        %v1412 = vmul.f32 %v1407, %v1411
        %vm1413 = vweird.f32 %v1405
        %vm1414 = vweird.f32 %v1407
        %vm1415 = vmor %vm1413, %vm1414
        %v1416 = vsel %vm1415, %v1407, %v1412
        %v1417 = vrsqrt.pop %v1406
        %v1418 = vmul.f32 %v1417, %v1406
        %v1419 = vmul.f32 %v1418, %v1417
        %v1420 = vmul.f32 0.5, %v1419
        %v1421 = vsub.f32 1.5, %v1420
        %v1422 = vmul.f32 %v1417, %v1421
        %vm1423 = vweird.f32 %v1406
        %vm1424 = vweird.f32 %v1417
        %vm1425 = vmor %vm1423, %vm1424
        %v1426 = vsel %vm1425, %v1417, %v1422
        %v1427 = vmul.f32 %v1393, %v1416
        %v1428 = vmul.f32 %v1394, %v1426
        %v1430 = vperm.slane %v1376, 0
        %v1432 = vmul.f32 %v1427, %v1430
        %v1433 = vmul.f32 %v1428, %v1430
        %v1435 = vperm.slane %v1377, 0
        %v1437 = vadd.f32 %v1432, %v1435
        %v1438 = vadd.f32 %v1433, %v1435
        %v1439 = vpack.c.bf16 %v1438, %v1437
        %v1440 = vld [vmem:[%s716] sm:$0xf]
        %v1441 = vld [vmem:[%s716 + $0x4] sm:$0xf]
        %v1442 = vld [vmem:[%s716 + $0x8] sm:$0xf]
        %v1443 = vld [vmem:[%s716 + $0xc] sm:$0xf]
        %v1444 = vld [vmem:[%s719] sm:$0x1]
        %v1446 = vperm.slane %v1444, 0
        %v1452 = vunpack.c.l.b16 %v1440
        %v1453 = vunpack.c.l.b16 %v1441
        %v1454 = vunpack.c.l.b16 %v1442
        %v1455 = vunpack.c.l.b16 %v1443
        %v1456 = vpack.c.b16 %v1453, %v1452
        %v1457 = vpack.c.b16 %v1455, %v1454
        %v1461 = vsel %vm830, %v1439, 0
        %1463 = vmatpush.bf16.msra.mxu0 0
        %1464 = vmatpush.bf16.msra.mxu0 0
        %1465 = vmatpush.bf16.msra.mxu0 0
        %1466 = vmatpush.bf16.msra.mxu0 0
        %1467 = vmatpush.bf16.msra.mxu0 0
        %1468 = vmatpush.bf16.msra.mxu0 0
        %1469 = vmatpush.bf16.msra.mxu0 %v1457
        %1470 = vmatpush.bf16.msra.mxu0 %v1456
        %1471 = vmatmul.bf16.gmra.mxu0 %v1461
        %v1472 = vpop.f32.mrf.mxu0
        %v1473 = vadd.f32 %v1446, %v1472
        %v1474 = vpop.f32.mrf.mxu0
        %v1475 = vadd.f32 %v1446, %v1474
        %1476 = vdwg.mxu0
        %v1477 = vmul.f32 %v1473, 0.5
        %v1478 = vmul.f32 %v1475, 0.5
        %v1479 = vmul.f32 %v1473, 0.044715
        %v1480 = vmul.f32 %v1475, 0.044715
        %v1481 = vmul.f32 %v1479, %v1473
        %v1482 = vmul.f32 %v1480, %v1475
        %v1483 = vmul.f32 %v1481, %v1473
        %v1484 = vmul.f32 %v1482, %v1475
        %v1485 = vadd.f32 %v1473, %v1483
        %v1486 = vadd.f32 %v1475, %v1484
        %v1487 = vmul.f32 %v1485, 0.7978846
        %v1488 = vmul.f32 %v1486, 0.7978846
        %v1489 = vtanh.pop %v1487
        %v1490 = vtanh.pop %v1488
        %v1491 = vadd.f32 %v1489, 1.0
        %v1492 = vadd.f32 %v1490, 1.0
        %v1493 = vmul.f32 %v1477, %v1491
        %v1494 = vmul.f32 %v1478, %v1492
        %v1495 = vpack.c.bf16 %v1494, %v1493
        %v1496 = vld [vmem:[%s724] sm:$0xf]
        %v1497 = vld [vmem:[%s724 + $0x4] sm:$0xf]
        %v1498 = vld [vmem:[%s724 + $0x8] sm:$0xf]
        %v1499 = vld [vmem:[%s724 + $0xc] sm:$0xf]
        %v1500 = vld [vmem:[%s724 + $0x10] sm:$0xf]
        %v1501 = vld [vmem:[%s724 + $0x14] sm:$0xf]
        %v1502 = vld [vmem:[%s724 + $0x18] sm:$0xf]
        %v1503 = vld [vmem:[%s724 + $0x1c] sm:$0xf]
        %v1504 = vld [vmem:[%s727] sm:$0x1]
        %v1506 = vperm.slane %v1504, 0
        %v1516 = vunpack.c.l.b16 %v1496
        %v1517 = vunpack.c.l.b16 %v1497
        %v1518 = vunpack.c.l.b16 %v1498
        %v1519 = vunpack.c.l.b16 %v1499
        %v1520 = vunpack.c.l.b16 %v1500
        %v1521 = vunpack.c.l.b16 %v1501
        %v1522 = vunpack.c.l.b16 %v1502
        %v1523 = vunpack.c.l.b16 %v1503
        %v1524 = vpack.c.b16 %v1517, %v1516
        %v1525 = vpack.c.b16 %v1519, %v1518
        %v1526 = vpack.c.b16 %v1521, %v1520
        %v1527 = vpack.c.b16 %v1523, %v1522
        %vm1532 = vcmask 523264
        %v1534 = vsel %vm1532, %v1495, 0
        %1536 = vmatpush.bf16.msra.mxu0 0
        %1537 = vmatpush.bf16.msra.mxu0 0
        %1538 = vmatpush.bf16.msra.mxu0 0
        %1539 = vmatpush.bf16.msra.mxu0 0
        %1540 = vmatpush.bf16.msra.mxu0 %v1527
        %1541 = vmatpush.bf16.msra.mxu0 %v1526
        %1542 = vmatpush.bf16.msra.mxu0 %v1525
        %1543 = vmatpush.bf16.msra.mxu0 %v1524
        %1544 = vmatmul.bf16.gmra.mxu0 %v1534
        %v1545 = vpop.f32.mrf.mxu0
        %v1546 = vadd.f32 %v1506, %v1545
        %v1547 = vpop.f32.mrf.mxu0
        %v1548 = vadd.f32 %v1506, %v1547
        %1549 = vdwg.mxu0
        %v1550 = vadd.f32 %v1546, %v1437
        %v1551 = vadd.f32 %v1548, %v1438
        %v1552 = vld [vmem:[%s730] sm:$0x1]
        %v1553 = vld [vmem:[%s733] sm:$0x1]
        %v1554 = vsel %vm830, %v1550, 0.0
        %1555 = vadd.xlane.f32.xlu0 %v1554
        %v1556 = vpop.xlane.xlu0 %1555
        %v1557 = vsel %vm830, %v1551, 0.0
        %1558 = vadd.xlane.f32.xlu0 %v1557
        %v1559 = vpop.xlane.xlu0 %1558
        %v1560 = vmul.f32 %v1556, %v1390
        %v1561 = vmul.f32 %v1559, %v1390
        %v1562 = vsub.f32 %v1550, %v1560
        %v1563 = vsub.f32 %v1551, %v1561
        %v1564 = vmul.f32 %v1562, %v1562
        %v1565 = vmul.f32 %v1563, %v1563
        %v1566 = vsel %vm830, %v1564, 0.0
        %1567 = vadd.xlane.f32.xlu0 %v1566
        %v1568 = vpop.xlane.xlu0 %1567
        %v1569 = vsel %vm830, %v1565, 0.0
        %1570 = vadd.xlane.f32.xlu0 %v1569
        %v1571 = vpop.xlane.xlu0 %1570
        %v1572 = vmul.f32 %v1568, %v1390
        %v1573 = vmul.f32 %v1571, %v1390
        %v1574 = vadd.f32 %v1572, 1e-12
        %v1575 = vadd.f32 %v1573, 1e-12
        %v1576 = vrsqrt.pop %v1574
        %v1577 = vmul.f32 %v1576, %v1574
        %v1578 = vmul.f32 %v1577, %v1576
        %v1579 = vmul.f32 0.5, %v1578
        %v1580 = vsub.f32 1.5, %v1579
        %v1581 = vmul.f32 %v1576, %v1580
        %vm1582 = vweird.f32 %v1574
        %vm1583 = vweird.f32 %v1576
        %vm1584 = vmor %vm1582, %vm1583
        %v1585 = vsel %vm1584, %v1576, %v1581
        %v1586 = vrsqrt.pop %v1575
        %v1587 = vmul.f32 %v1586, %v1575
        %v1588 = vmul.f32 %v1587, %v1586
        %v1589 = vmul.f32 0.5, %v1588
        %v1590 = vsub.f32 1.5, %v1589
        %v1591 = vmul.f32 %v1586, %v1590
        %vm1592 = vweird.f32 %v1575
        %vm1593 = vweird.f32 %v1586
        %vm1594 = vmor %vm1592, %vm1593
        %v1595 = vsel %vm1594, %v1586, %v1591
        %v1596 = vmul.f32 %v1562, %v1585
        %v1597 = vmul.f32 %v1563, %v1595
        %v1599 = vperm.slane %v1552, 0
        %v1601 = vmul.f32 %v1596, %v1599
        %v1602 = vmul.f32 %v1597, %v1599
        %v1604 = vperm.slane %v1553, 0
        %v1606 = vadd.f32 %v1601, %v1604
        %v1607 = vadd.f32 %v1602, %v1604
        %1608 = vst.msk [vmem:[#allocation2] sm:$0xff] %vm830, %v1606
        %1609 = vst.msk [vmem:[#allocation2 + $0x8] sm:$0xff] %vm830, %v1607
        %p1610 = scmp.eq.s32.totalorder %s30, 1
        // Predicated region
        $region97: #{text_model_forward.1} parent=91 // pred_check
          %p1611 = pneg %p1610
        $region98: #{text_model_forward.1} parent=91 // pred_check_branch
          %1613 = sbr.rel (%p1611) target = $region100
        $region99: #{text_model_forward.1} parent=91 // pred_region
          %v1614 = vpack.c.bf16 %v1606, %v1606
          %v1615 = vpack.c.bf16 %v1607, %v1607
          %v1616 = vld [vmem:[%s16] sm:$0xff]
          %v1617 = vld [vmem:[%s16 + $0x8] sm:$0xff]
          %v1618 = vld [vmem:[%s16 + $0x10] sm:$0xff]
          %v1619 = vld [vmem:[%s16 + $0x18] sm:$0xff]
          %v1620 = vld [vmem:[%s16 + $0x20] sm:$0xff]
          %v1621 = vld [vmem:[%s16 + $0x28] sm:$0xff]
          %v1622 = vld [vmem:[%s16 + $0x30] sm:$0xff]
          %v1623 = vld [vmem:[%s16 + $0x38] sm:$0xff]
          %v1624 = vld [vmem:[%s17] sm:$0xf]
          %v1626 = vperm.slane %v1624, 0
          %v1627 = vperm.slane %v1624, 1
          %v1628 = vperm.slane %v1624, 2
          %v1629 = vperm.slane %v1624, 3
          %v1636 = vunpack.c.l.b16 %v1614
          %v1637 = vunpack.c.l.b16 %v1615
          %v1638 = vrot.slane %v1637, 7
          %vm1639 = vcmask 1041409
          %v1640 = vsel %vm1639, %v1638, %v1636
          %v1641 = vpack.c.b16 %v1640, %v1640
          %v1650 = vunpack.c.l.b16 %v1616
          %v1651 = vunpack.c.h.b16 %v1616
          %v1652 = vunpack.c.l.b16 %v1617
          %v1653 = vunpack.c.h.b16 %v1617
          %v1654 = vunpack.c.l.b16 %v1618
          %v1655 = vunpack.c.h.b16 %v1618
          %v1656 = vunpack.c.l.b16 %v1619
          %v1657 = vunpack.c.h.b16 %v1619
          %v1658 = vunpack.c.l.b16 %v1620
          %v1659 = vunpack.c.h.b16 %v1620
          %v1660 = vunpack.c.l.b16 %v1621
          %v1661 = vunpack.c.h.b16 %v1621
          %v1662 = vunpack.c.l.b16 %v1622
          %v1663 = vunpack.c.h.b16 %v1622
          %v1664 = vunpack.c.l.b16 %v1623
          %v1665 = vunpack.c.h.b16 %v1623
          %v1666 = vpack.c.b16 %v1654, %v1650
          %v1667 = vpack.c.b16 %v1655, %v1651
          %v1668 = vpack.c.b16 %v1656, %v1652
          %v1669 = vpack.c.b16 %v1657, %v1653
          %v1670 = vpack.c.b16 %v1662, %v1658
          %v1671 = vpack.c.b16 %v1663, %v1659
          %v1672 = vpack.c.b16 %v1664, %v1660
          %v1673 = vpack.c.b16 %v1665, %v1661
          %v1683 = vsel %vm830, %v1641, 0
          %1685 = vmatpush.bf16.msra.mxu0 0
          %1686 = vmatpush.bf16.msra.mxu0 0
          %1687 = vmatpush.bf16.msra.mxu0 0
          %1688 = vmatpush.bf16.msra.mxu0 0
          %1689 = vmatpush.bf16.msra.mxu0 0
          %1690 = vmatpush.bf16.msra.mxu0 0
          %1691 = vmatpush.bf16.msra.mxu0 %v1670
          %1692 = vmatpush.bf16.msra.mxu0 %v1666
          %1693 = vmatmul.bf16.gmra.mxu0 %v1683
          %v1694 = vpop.f32.mrf.mxu0
          %v1695 = vadd.f32 %v1626, %v1694
          %v1696 = vpop.f32.mrf.mxu0
          %1697 = vdwg.mxu0
          %1698 = vmatpush.bf16.msra.mxu0 0
          %1699 = vmatpush.bf16.msra.mxu0 0
          %1700 = vmatpush.bf16.msra.mxu0 0
          %1701 = vmatpush.bf16.msra.mxu0 0
          %1702 = vmatpush.bf16.msra.mxu0 0
          %1703 = vmatpush.bf16.msra.mxu0 0
          %1704 = vmatpush.bf16.msra.mxu0 %v1671
          %1705 = vmatpush.bf16.msra.mxu0 %v1667
          %1706 = vmatmul.bf16.gmra.mxu0 %v1683
          %v1707 = vpop.f32.mrf.mxu0
          %v1708 = vadd.f32 %v1627, %v1707
          %v1709 = vpop.f32.mrf.mxu0
          %1710 = vdwg.mxu0
          %1711 = vmatpush.bf16.msra.mxu0 0
          %1712 = vmatpush.bf16.msra.mxu0 0
          %1713 = vmatpush.bf16.msra.mxu0 0
          %1714 = vmatpush.bf16.msra.mxu0 0
          %1715 = vmatpush.bf16.msra.mxu0 0
          %1716 = vmatpush.bf16.msra.mxu0 0
          %1717 = vmatpush.bf16.msra.mxu0 %v1672
          %1718 = vmatpush.bf16.msra.mxu0 %v1668
          %1719 = vmatmul.bf16.gmra.mxu0 %v1683
          %v1720 = vpop.f32.mrf.mxu0
          %v1721 = vadd.f32 %v1628, %v1720
          %v1722 = vpop.f32.mrf.mxu0
          %1723 = vdwg.mxu0
          %1724 = vmatpush.bf16.msra.mxu0 0
          %1725 = vmatpush.bf16.msra.mxu0 0
          %1726 = vmatpush.bf16.msra.mxu0 0
          %1727 = vmatpush.bf16.msra.mxu0 0
          %1728 = vmatpush.bf16.msra.mxu0 0
          %1729 = vmatpush.bf16.msra.mxu0 0
          %1730 = vmatpush.bf16.msra.mxu0 %v1673
          %1731 = vmatpush.bf16.msra.mxu0 %v1669
          %1732 = vmatmul.bf16.gmra.mxu0 %v1683
          %v1733 = vpop.f32.mrf.mxu0
          %v1734 = vadd.f32 %v1629, %v1733
          %v1735 = vpop.f32.mrf.mxu0
          %1736 = vdwg.mxu0
          %v1741 = vrot.slane %v1708, 6
          %v1742 = vrot.slane %v1721, 4
          %v1743 = vrot.slane %v1734, 2
          %vm1744 = vcmask 1041408
          %v1745 = vsel %vm1744, %v1695, %v1741
          %vm1746 = vcmask 1045508
          %v1747 = vsel %vm1746, %v1742, %v1743
          %v1748 = vsel %vm930, %v1745, %v1747
          %1750 = vst [vmem:[#allocation3] sm:$0xff] %v1748
        $region100: #{text_model_forward.1} parent=91 // pred_fallthru
          _
        // Predicated region
        $region101: #{text_model_forward.1} parent=91 // pred_check
          %p1751 = pneg %p481
        $region102: #{text_model_forward.1} parent=91 // pred_check_branch
          %1753 = sbr.rel (%p1751) target = $region104
        $region103: #{text_model_forward.1} parent=91 // pred_region
          %1755 = vsyncadd [#allocation4], 0
          %s1757 = sshll.u32 [#allocation3], 4
          %s1758 = int_to_ptr.vmem [resolvable:$true] %s1757
          %s1759 = sshll.u32 %s18, 4
          %s1760 = int_to_ptr.hbm [resolvable:$true] %s1759
          %1762 = dma.vmem_to_hbm [thread:$0]  %s1758, 128, %s1760, [#allocation4]
        $region104: #{text_model_forward.1} parent=91 // pred_fallthru
          _
        // Predicated region
        $region105: #{text_model_forward.1} parent=91 // pred_check
          %p1763 = pneg %p481
        $region106: #{text_model_forward.1} parent=91 // pred_check_branch
          %1765 = sbr.rel (%p1763) target = $region108
        $region107: #{text_model_forward.1} parent=91 // pred_region
          %1767 = dma.done [#allocation4], 128
        $region108: #{text_model_forward.1} parent=91 // pred_fallthru
          _
      $region92: #{text_model_forward.1} parent=5 // pred_fallthru
        _
      %p1768 = scmp.le.s32.totalorder 2, %s25
      // Predicated region
      $region109: #{text_model_forward.1} parent=5 // pred_check
        %p1769 = pneg %p1768
      $region110: #{text_model_forward.1} parent=5 // pred_check_branch
        %1771 = sbr.rel (%p1769) target = $region112
      $region111: #{text_model_forward.1} parent=5 // pred_region
        %s1772 = ssub.s32 %s25, 2
      $region112: #{text_model_forward.1} parent=5 // pred_fallthru
        _
    $region6: #{text_model_forward.1} parent=1 // loop_footer
      %s29 = sadd.s32 1, %s25
    $region7: #{text_model_forward.1} parent=1 // loop_footer_branch
      %24 = sbr.rel target = $region3
    $region8: #{text_model_forward.1} parent=1 // loop_exit
      _
    %1773 = vsyncpa [#allocation4], 1
    %s1774 = scalar_lea.sflag [#allocation4], 1
    %1775 = vsyncpa %s1774, 1

</llo_original>
